<compile_context>
chip_gen: v6e
topology: v6e:2x2x1
jax: 0.10.0
libtpu: 0.0.40
codegen_flags: <defaults>
</compile_context>

<pallas_src>
import functools

import jax
import jax.numpy as jnp
from jax import lax
from jax.experimental import pallas as pl
from jax.experimental.pallas import tpu as pltpu


def _bf16_dot(a, b):
    """MXU matmul with bf16 operands, f32 accumulation."""
    return jnp.dot(a.astype(jnp.bfloat16), b.astype(jnp.bfloat16),
                   preferred_element_type=jnp.float32)


# ----------------------------------------------------------------------------
# Pallas kernel: one graph-batch per grid step (adjacency build + 3 GCN layers
# + mean pool + fc, all resident in VMEM).
# ----------------------------------------------------------------------------
def gcn_classifier_kernel(src_row_ref, src_col_ref, dst_row_ref, ew_ref,
                          batch_ref, x_ref,
                          w1_ref, b1_ref, w2_ref, b2_ref, w3_ref, b3_ref,
                          wfc_ref, bfc_ref,
                          out_ref):
    n = x_ref.shape[0]
    e = ew_ref.shape[1]
    g = out_ref.shape[0]

    src_r = src_row_ref[...]            # [1, E] int32 (source node per edge)
    src_c = src_col_ref[...]            # [E, 1] int32 (same, column layout)
    dst_r = dst_row_ref[...]            # [1, E] int32 (target node per edge)
    ew = ew_ref[...]                    # [1, E] f32   (edge weights)

    # --- one-hot incidence masks (built from iota, no gather/scatter) ---
    node_rows = lax.broadcasted_iota(jnp.int32, (n, e), 0)
    dst_mask = (node_rows == dst_r).astype(jnp.float32)          # [N, E]
    src_mask = (node_rows == src_r).astype(jnp.float32)          # [N, E]

    # --- gcn_norm: deg (with self-loop weight 1), symmetric normalization ---
    deg = jnp.sum(dst_mask * ew, axis=1, keepdims=True) + 1.0    # [N, 1], >= 1
    dinv = lax.rsqrt(deg)                                        # [N, 1]
    dinv_dst = jnp.sum(dst_mask * dinv, axis=0, keepdims=True)   # [1, E] = dinv[dst_e]
    dinv_src = jnp.sum(src_mask * dinv, axis=0, keepdims=True)   # [1, E] = dinv[src_e]
    norm = dinv_dst * ew * dinv_src                              # [1, E]

    # --- dense A_hat[target, source] via one MXU matmul + self-loop diagonal ---
    node_cols = lax.broadcasted_iota(jnp.int32, (e, n), 1)
    src_mask_t = (node_cols == src_c).astype(jnp.float32)        # [E, N]
    a_hat = jnp.dot(dst_mask * norm, src_mask_t,
                    preferred_element_type=jnp.float32)          # [N, N]
    row_ids = lax.broadcasted_iota(jnp.int32, (n, n), 0)
    col_ids = lax.broadcasted_iota(jnp.int32, (n, n), 1)
    eye = (row_ids == col_ids).astype(jnp.float32)
    a_hat = a_hat + eye * (dinv * dinv)

    # --- 3 x (GCNConv + ReLU): bf16 MXU operands, f32 accumulation ---
    h = _bf16_dot(x_ref[...], w1_ref[...])
    h = jnp.maximum(_bf16_dot(a_hat, h) + b1_ref[...], 0.0)
    h = _bf16_dot(h, w2_ref[...])
    h = jnp.maximum(_bf16_dot(a_hat, h) + b2_ref[...], 0.0)
    h = _bf16_dot(h, w3_ref[...])
    h = jnp.maximum(_bf16_dot(a_hat, h) + b3_ref[...], 0.0)

    # --- global_mean_pool: pool matrix built in-kernel from the batch vector ---
    batch_v = batch_ref[...]                                     # [1, N] int32
    graph_ids = lax.broadcasted_iota(jnp.int32, (g, n), 0)
    pool_mask = (graph_ids == batch_v).astype(jnp.float32)       # [G, N]
    counts = jnp.maximum(jnp.sum(pool_mask, axis=1, keepdims=True), 1.0)
    pooled = jnp.dot(pool_mask, h, preferred_element_type=jnp.float32) / counts

    # --- fc ---
    out_ref[...] = (jnp.dot(pooled, wfc_ref[...],
                            preferred_element_type=jnp.float32)
                    + bfc_ref[...]).astype(out_ref.dtype)


# ----------------------------------------------------------------------------
# Wrapper: B graph-batches per launch, grid=(B,), "parallel" for megacore.
# ----------------------------------------------------------------------------
@functools.partial(jax.jit, static_argnames=("num_graphs",))
def gcn_classifier_forward(x, edge_index, edge_attr, batch, params, *, num_graphs):
    """x:[B,N,Cin] f32, edge_index:[B,2,E] i32, edge_attr:[B,E], batch:[B,N] i32."""
    B, N, C_in = x.shape
    E = edge_index.shape[-1]
    w1, b1, w2, b2, w3, b3, wfc, bfc = params
    H = w1.shape[1]
    C_out = wfc.shape[1]
    G = num_graphs

    src = edge_index[:, 0, :].astype(jnp.int32)
    dst = edge_index[:, 1, :].astype(jnp.int32)
    src_row = src.reshape(B, 1, E)
    src_col = src.reshape(B, E, 1)      # column layout avoids an in-kernel transpose
    dst_row = dst.reshape(B, 1, E)
    ew = edge_attr.reshape(B, 1, E).astype(jnp.float32)
    batch_v = batch.reshape(B, 1, N).astype(jnp.int32)
    xf = x.astype(jnp.float32)

    def per_b(shape):   # one block per graph-batch, leading dim squeezed
        return pl.BlockSpec((None,) + shape, lambda b: (b,) + (0,) * len(shape))

    def const(shape):   # grid-invariant (weights/biases stay VMEM-resident)
        return pl.BlockSpec(shape, lambda b: (0,) * len(shape))

    in_specs = [
        per_b((1, E)),        # src_row
        per_b((E, 1)),        # src_col
        per_b((1, E)),        # dst_row
        per_b((1, E)),        # edge weights
        per_b((1, N)),        # batch vector
        per_b((N, C_in)),     # node features
        const((C_in, H)), const((1, H)),
        const((H, H)), const((1, H)),
        const((H, H)), const((1, H)),
        const((H, C_out)), const((1, C_out)),
    ]
    out_spec = per_b((G, C_out))
    # TODO(synk): logits stay a narrow [G, C_out] (masked lane store); packing many
    # batches into a lane-dense slab would need a post-kernel reshape of the API shape.

    # advisory cost estimate (dominant matmul terms)
    flops = B * (2 * N * E * N                              # adjacency build
                 + 3 * 2 * N * N * H                        # 3x aggregation
                 + 2 * N * C_in * H + 2 * 2 * N * H * H     # feature transforms
                 + 2 * G * N * H + 2 * G * H * C_out)       # pool + fc
    bytes_accessed = 4 * (3 * B * E + B * E + B * N + B * N * C_in
                          + sum(int(p.size) for p in params) + B * G * C_out)

    return pl.pallas_call(
        gcn_classifier_kernel,
        out_shape=jax.ShapeDtypeStruct((B, G, C_out), jnp.float32),
        grid=(B,),
        in_specs=in_specs,
        out_specs=out_spec,
        compiler_params=pltpu.CompilerParams(
            dimension_semantics=("parallel",),
            vmem_limit_bytes=32 * 1024 * 1024,
        ),
        cost_estimate=pl.CostEstimate(flops=flops, transcendentals=B * N,
                                      bytes_accessed=bytes_accessed),
    )(src_row, src_col, dst_row, ew, batch_v, xf,
      w1, b1, w2, b2, w3, b3, wfc, bfc)


# ----------------------------------------------------------------------------
# Pure-JAX reference (scatter-built adjacency; mirrors the bf16 cast points).
# ----------------------------------------------------------------------------
def reference_forward(x, edge_index, edge_attr, batch, params, num_graphs):
    w1, b1, w2, b2, w3, b3, wfc, bfc = params

    def one(xb, eib, eab, bb):
        n = xb.shape[0]
        src, dst = eib[0], eib[1]
        loop = jnp.arange(n, dtype=src.dtype)
        src = jnp.concatenate([src, loop])
        dst = jnp.concatenate([dst, loop])
        w = jnp.concatenate([eab.astype(jnp.float32), jnp.ones((n,), jnp.float32)])
        deg = jnp.zeros((n,), jnp.float32).at[dst].add(w)
        dinv = jnp.where(deg > 0, lax.rsqrt(deg), 0.0)
        norm = dinv[dst] * w * dinv[src]
        a_hat = jnp.zeros((n, n), jnp.float32).at[dst, src].add(norm)

        h = jax.nn.relu(_bf16_dot(a_hat, _bf16_dot(xb, w1)) + b1)
        h = jax.nn.relu(_bf16_dot(a_hat, _bf16_dot(h, w2)) + b2)
        h = jax.nn.relu(_bf16_dot(a_hat, _bf16_dot(h, w3)) + b3)
        onehot = (bb[None, :] == jnp.arange(num_graphs)[:, None]).astype(jnp.float32)
        counts = jnp.maximum(onehot.sum(1, keepdims=True), 1.0)
        pooled = (onehot @ h) / counts
        return pooled @ wfc + bfc

    return jnp.stack([one(x[i], edge_index[i], edge_attr[i], batch[i])
                      for i in range(x.shape[0])])


# ----------------------------------------------------------------------------
# Main
# ----------------------------------------------------------------------------
if __name__ == "__main__":
    key = jax.random.PRNGKey(0)

    IN_CHANNELS, HIDDEN_CHANNELS, OUT_CHANNELS = 8, 32, 4
    NUM_NODES, NUM_EDGES, NUM_GRAPHS = 16, 48, 2
    NUM_BATCHES = 4        # graph-batches processed per pallas_call

    keys = jax.random.split(key, 10)

    def glorot(k, shape):
        fan_in, fan_out = shape
        lim = (6.0 / (fan_in + fan_out)) ** 0.5
        return jax.random.uniform(k, shape, jnp.float32, -lim, lim)

    w1 = glorot(keys[0], (IN_CHANNELS, HIDDEN_CHANNELS))
    b1 = jnp.zeros((1, HIDDEN_CHANNELS), jnp.float32)
    w2 = glorot(keys[1], (HIDDEN_CHANNELS, HIDDEN_CHANNELS))
    b2 = jnp.zeros((1, HIDDEN_CHANNELS), jnp.float32)
    w3 = glorot(keys[2], (HIDDEN_CHANNELS, HIDDEN_CHANNELS))
    b3 = jnp.zeros((1, HIDDEN_CHANNELS), jnp.float32)
    wfc = glorot(keys[3], (HIDDEN_CHANNELS, OUT_CHANNELS))
    bfc = jax.random.uniform(keys[4], (1, OUT_CHANNELS), jnp.float32, -0.1, 0.1)
    params = (w1, b1, w2, b2, w3, b3, wfc, bfc)

    # synthetic batched graph data: B independent graph-batches, each with
    # NUM_GRAPHS disconnected graphs (nodes 0..7 -> graph 0, 8..15 -> graph 1)
    npg = NUM_NODES // NUM_GRAPHS
    x = jax.random.normal(keys[5], (NUM_BATCHES, NUM_NODES, IN_CHANNELS), jnp.float32)
    src = jax.random.randint(keys[6], (NUM_BATCHES, NUM_EDGES), 0, NUM_NODES, jnp.int32)
    dst_off = jax.random.randint(keys[7], (NUM_BATCHES, NUM_EDGES), 0, npg, jnp.int32)
    dst = (src // npg) * npg + dst_off            # edges stay within their graph block
    edge_index = jnp.stack([src, dst], axis=1)    # [B, 2, E]
    edge_attr = jax.random.uniform(keys[8], (NUM_BATCHES, NUM_EDGES), jnp.float32, 0.1, 1.0)
    batch = jnp.tile(jnp.repeat(jnp.arange(NUM_GRAPHS, dtype=jnp.int32), npg)[None, :],
                     (NUM_BATCHES, 1))            # [B, N]

    out = gcn_classifier_forward(x, edge_index, edge_attr, batch, params,
                                 num_graphs=NUM_GRAPHS)
    out = jax.block_until_ready(out)

    ref = reference_forward(x, edge_index, edge_attr, batch, params, NUM_GRAPHS)
    assert out.shape == (NUM_BATCHES, NUM_GRAPHS, OUT_CHANNELS)
    assert jnp.allclose(out, ref, atol=2e-2, rtol=2e-2), "kernel mismatch vs reference"

    print("KERNEL_OK")
</pallas_src>

<mosaic_0001>
module attributes {stable_mosaic.version = 11 : i64} {
  func.func @gcn_classifier_kernel(%arg0: i32, %arg1: memref<1x1x48xi32, #tpu.memory_space<vmem>>, %arg2: memref<1x48x1xi32, #tpu.memory_space<vmem>>, %arg3: memref<1x1x48xi32, #tpu.memory_space<vmem>>, %arg4: memref<1x1x48xf32, #tpu.memory_space<vmem>>, %arg5: memref<1x1x16xi32, #tpu.memory_space<vmem>>, %arg6: memref<1x16x8xf32, #tpu.memory_space<vmem>>, %arg7: memref<8x32xf32, #tpu.memory_space<vmem>>, %arg8: memref<1x32xf32, #tpu.memory_space<vmem>>, %arg9: memref<32x32xf32, #tpu.memory_space<vmem>>, %arg10: memref<1x32xf32, #tpu.memory_space<vmem>>, %arg11: memref<32x32xf32, #tpu.memory_space<vmem>>, %arg12: memref<1x32xf32, #tpu.memory_space<vmem>>, %arg13: memref<32x4xf32, #tpu.memory_space<vmem>>, %arg14: memref<1x4xf32, #tpu.memory_space<vmem>>, %arg15: memref<1x2x4xf32, #tpu.memory_space<vmem>>) attributes {dimension_semantics = [#tpu.dimension_semantics<parallel>], iteration_bounds = array<i64: 4>, scalar_prefetch = 0 : i64, scratch_operands = 0 : i64, tpu.core_type = #tpu.core_type<tc>, window_params = [{transform_indices = @transform_0, window_bounds = array<i64: 1, 1, 48>}, {transform_indices = @transform_1, window_bounds = array<i64: 1, 48, 1>}, {transform_indices = @transform_2, window_bounds = array<i64: 1, 1, 48>}, {transform_indices = @transform_3, window_bounds = array<i64: 1, 1, 48>}, {transform_indices = @transform_4, window_bounds = array<i64: 1, 1, 16>}, {transform_indices = @transform_5, window_bounds = array<i64: 1, 16, 8>}, {pipeline_mode = #tpu.pipeline_mode<synchronous>, transform_indices = @transform_6, window_bounds = array<i64: 8, 32>}, {pipeline_mode = #tpu.pipeline_mode<synchronous>, transform_indices = @transform_7, window_bounds = array<i64: 1, 32>}, {pipeline_mode = #tpu.pipeline_mode<synchronous>, transform_indices = @transform_8, window_bounds = array<i64: 32, 32>}, {pipeline_mode = #tpu.pipeline_mode<synchronous>, transform_indices = @transform_9, window_bounds = array<i64: 1, 32>}, {pipeline_mode = #tpu.pipeline_mode<synchronous>, transform_indices = @transform_10, window_bounds = array<i64: 32, 32>}, {pipeline_mode = #tpu.pipeline_mode<synchronous>, transform_indices = @transform_11, window_bounds = array<i64: 1, 32>}, {pipeline_mode = #tpu.pipeline_mode<synchronous>, transform_indices = @transform_12, window_bounds = array<i64: 32, 4>}, {pipeline_mode = #tpu.pipeline_mode<synchronous>, transform_indices = @transform_13, window_bounds = array<i64: 1, 4>}, {transform_indices = @transform_14, window_bounds = array<i64: 1, 2, 4>}]} {
    %c0 = arith.constant 0 : index
    %c0_0 = arith.constant 0 : index
    %c0_1 = arith.constant 0 : index
    %0 = vector.load %arg1[%c0, %c0_0, %c0_1] : memref<1x1x48xi32, #tpu.memory_space<vmem>>, vector<1x1x48xi32>
    %1 = vector.shape_cast %0 : vector<1x1x48xi32> to vector<1x48xi32>
    %c0_2 = arith.constant 0 : index
    %c0_3 = arith.constant 0 : index
    %c0_4 = arith.constant 0 : index
    %2 = vector.load %arg2[%c0_2, %c0_3, %c0_4] : memref<1x48x1xi32, #tpu.memory_space<vmem>>, vector<1x48x1xi32>
    %3 = vector.shape_cast %2 : vector<1x48x1xi32> to vector<48x1xi32>
    %c0_5 = arith.constant 0 : index
    %c0_6 = arith.constant 0 : index
    %c0_7 = arith.constant 0 : index
    %4 = vector.load %arg3[%c0_5, %c0_6, %c0_7] : memref<1x1x48xi32, #tpu.memory_space<vmem>>, vector<1x1x48xi32>
    %5 = vector.shape_cast %4 : vector<1x1x48xi32> to vector<1x48xi32>
    %c0_8 = arith.constant 0 : index
    %c0_9 = arith.constant 0 : index
    %c0_10 = arith.constant 0 : index
    %6 = vector.load %arg4[%c0_8, %c0_9, %c0_10] : memref<1x1x48xf32, #tpu.memory_space<vmem>>, vector<1x1x48xf32>
    %7 = vector.shape_cast %6 : vector<1x1x48xf32> to vector<1x48xf32>
    %8 = tpu.iota {dimensions = array<i32: 0>} : vector<16x48xi32>
    %9 = vector.broadcast %5 : vector<1x48xi32> to vector<16x48xi32>
    %10 = arith.cmpi eq, %8, %9 : vector<16x48xi32>
    %11 = arith.extui %10 : vector<16x48xi1> to vector<16x48xi32>
    %12 = arith.sitofp %11 : vector<16x48xi32> to vector<16x48xf32>
    %13 = vector.broadcast %1 : vector<1x48xi32> to vector<16x48xi32>
    %14 = arith.cmpi eq, %8, %13 : vector<16x48xi32>
    %15 = arith.extui %14 : vector<16x48xi1> to vector<16x48xi32>
    %16 = arith.sitofp %15 : vector<16x48xi32> to vector<16x48xf32>
    %17 = vector.broadcast %7 : vector<1x48xf32> to vector<16x48xf32>
    %18 = arith.mulf %12, %17 : vector<16x48xf32>
    %cst = arith.constant dense<0.000000e+00> : vector<16xf32>
    %19 = vector.multi_reduction <add>, %18, %cst [1] : vector<16x48xf32> to vector<16xf32>
    %20 = vector.shape_cast %19 : vector<16xf32> to vector<16x1xf32>
    %cst_11 = arith.constant 1.000000e+00 : f32
    %21 = vector.broadcast %cst_11 : f32 to vector<16x1xf32>
    %22 = arith.addf %20, %21 : vector<16x1xf32>
    %23 = math.rsqrt %22 : vector<16x1xf32>
    %24 = vector.broadcast %23 : vector<16x1xf32> to vector<16x48xf32>
    %25 = arith.mulf %12, %24 : vector<16x48xf32>
    %cst_12 = arith.constant dense<0.000000e+00> : vector<48xf32>
    %26 = vector.multi_reduction <add>, %25, %cst_12 [0] : vector<16x48xf32> to vector<48xf32>
    %27 = vector.shape_cast %26 : vector<48xf32> to vector<1x48xf32>
    %28 = vector.broadcast %23 : vector<16x1xf32> to vector<16x48xf32>
    %29 = arith.mulf %16, %28 : vector<16x48xf32>
    %cst_13 = arith.constant dense<0.000000e+00> : vector<48xf32>
    %30 = vector.multi_reduction <add>, %29, %cst_13 [0] : vector<16x48xf32> to vector<48xf32>
    %31 = vector.shape_cast %30 : vector<48xf32> to vector<1x48xf32>
    %32 = arith.mulf %27, %7 : vector<1x48xf32>
    %33 = arith.mulf %32, %31 : vector<1x48xf32>
    %34 = tpu.iota {dimensions = array<i32: 1>} : vector<48x16xi32>
    %35 = vector.broadcast %3 : vector<48x1xi32> to vector<48x16xi32>
    %36 = arith.cmpi eq, %34, %35 : vector<48x16xi32>
    %37 = arith.extui %36 : vector<48x16xi1> to vector<48x16xi32>
    %38 = arith.sitofp %37 : vector<48x16xi32> to vector<48x16xf32>
    %39 = vector.broadcast %33 : vector<1x48xf32> to vector<16x48xf32>
    %40 = arith.mulf %12, %39 : vector<16x48xf32>
    %cst_14 = arith.constant dense<0.000000e+00> : vector<16x16xf32>
    %41 = tpu.matmul %40, %38, %cst_14 {dimension_numbers = #tpu.dot_dimension_numbers<[1], [0], [0], [1], [0, 0, 1, 1], [], []>} : vector<16x48xf32>, vector<48x16xf32>, vector<16x16xf32> -> vector<16x16xf32>
    %42 = tpu.iota {dimensions = array<i32: 0>} : vector<16x16xi32>
    %43 = tpu.iota {dimensions = array<i32: 1>} : vector<16x16xi32>
    %44 = arith.cmpi eq, %42, %43 : vector<16x16xi32>
    %45 = arith.extui %44 : vector<16x16xi1> to vector<16x16xi32>
    %46 = arith.sitofp %45 : vector<16x16xi32> to vector<16x16xf32>
    %47 = arith.mulf %23, %23 : vector<16x1xf32>
    %48 = vector.broadcast %47 : vector<16x1xf32> to vector<16x16xf32>
    %49 = arith.mulf %46, %48 : vector<16x16xf32>
    %50 = arith.addf %41, %49 : vector<16x16xf32>
    %c0_15 = arith.constant 0 : index
    %c0_16 = arith.constant 0 : index
    %c0_17 = arith.constant 0 : index
    %51 = vector.load %arg6[%c0_15, %c0_16, %c0_17] : memref<1x16x8xf32, #tpu.memory_space<vmem>>, vector<1x16x8xf32>
    %52 = vector.shape_cast %51 : vector<1x16x8xf32> to vector<16x8xf32>
    %c0_18 = arith.constant 0 : index
    %c0_19 = arith.constant 0 : index
    %53 = vector.load %arg7[%c0_18, %c0_19] : memref<8x32xf32, #tpu.memory_space<vmem>>, vector<8x32xf32>
    %54 = arith.truncf %52 : vector<16x8xf32> to vector<16x8xbf16>
    %55 = arith.truncf %53 : vector<8x32xf32> to vector<8x32xbf16>
    %cst_20 = arith.constant dense<0.000000e+00> : vector<16x32xf32>
    %56 = tpu.matmul %54, %55, %cst_20 {dimension_numbers = #tpu.dot_dimension_numbers<[1], [0], [0], [1], [0, 0, 1, 1], [], []>} : vector<16x8xbf16>, vector<8x32xbf16>, vector<16x32xf32> -> vector<16x32xf32>
    %57 = arith.truncf %50 : vector<16x16xf32> to vector<16x16xbf16>
    %58 = arith.truncf %56 : vector<16x32xf32> to vector<16x32xbf16>
    %cst_21 = arith.constant dense<0.000000e+00> : vector<16x32xf32>
    %59 = tpu.matmul %57, %58, %cst_21 {dimension_numbers = #tpu.dot_dimension_numbers<[1], [0], [0], [1], [0, 0, 1, 1], [], []>} : vector<16x16xbf16>, vector<16x32xbf16>, vector<16x32xf32> -> vector<16x32xf32>
    %c0_22 = arith.constant 0 : index
    %c0_23 = arith.constant 0 : index
    %60 = vector.load %arg8[%c0_22, %c0_23] : memref<1x32xf32, #tpu.memory_space<vmem>>, vector<1x32xf32>
    %61 = vector.broadcast %60 : vector<1x32xf32> to vector<16x32xf32>
    %62 = arith.addf %59, %61 : vector<16x32xf32>
    %cst_24 = arith.constant 0.000000e+00 : f32
    %63 = vector.broadcast %cst_24 : f32 to vector<16x32xf32>
    %64 = arith.maximumf %62, %63 : vector<16x32xf32>
    %c0_25 = arith.constant 0 : index
    %c0_26 = arith.constant 0 : index
    %65 = vector.load %arg9[%c0_25, %c0_26] : memref<32x32xf32, #tpu.memory_space<vmem>>, vector<32x32xf32>
    %66 = arith.truncf %64 : vector<16x32xf32> to vector<16x32xbf16>
    %67 = arith.truncf %65 : vector<32x32xf32> to vector<32x32xbf16>
    %cst_27 = arith.constant dense<0.000000e+00> : vector<16x32xf32>
    %68 = tpu.matmul %66, %67, %cst_27 {dimension_numbers = #tpu.dot_dimension_numbers<[1], [0], [0], [1], [0, 0, 1, 1], [], []>} : vector<16x32xbf16>, vector<32x32xbf16>, vector<16x32xf32> -> vector<16x32xf32>
    %69 = arith.truncf %50 : vector<16x16xf32> to vector<16x16xbf16>
    %70 = arith.truncf %68 : vector<16x32xf32> to vector<16x32xbf16>
    %cst_28 = arith.constant dense<0.000000e+00> : vector<16x32xf32>
    %71 = tpu.matmul %69, %70, %cst_28 {dimension_numbers = #tpu.dot_dimension_numbers<[1], [0], [0], [1], [0, 0, 1, 1], [], []>} : vector<16x16xbf16>, vector<16x32xbf16>, vector<16x32xf32> -> vector<16x32xf32>
    %c0_29 = arith.constant 0 : index
    %c0_30 = arith.constant 0 : index
    %72 = vector.load %arg10[%c0_29, %c0_30] : memref<1x32xf32, #tpu.memory_space<vmem>>, vector<1x32xf32>
    %73 = vector.broadcast %72 : vector<1x32xf32> to vector<16x32xf32>
    %74 = arith.addf %71, %73 : vector<16x32xf32>
    %cst_31 = arith.constant 0.000000e+00 : f32
    %75 = vector.broadcast %cst_31 : f32 to vector<16x32xf32>
    %76 = arith.maximumf %74, %75 : vector<16x32xf32>
    %c0_32 = arith.constant 0 : index
    %c0_33 = arith.constant 0 : index
    %77 = vector.load %arg11[%c0_32, %c0_33] : memref<32x32xf32, #tpu.memory_space<vmem>>, vector<32x32xf32>
    %78 = arith.truncf %76 : vector<16x32xf32> to vector<16x32xbf16>
    %79 = arith.truncf %77 : vector<32x32xf32> to vector<32x32xbf16>
    %cst_34 = arith.constant dense<0.000000e+00> : vector<16x32xf32>
    %80 = tpu.matmul %78, %79, %cst_34 {dimension_numbers = #tpu.dot_dimension_numbers<[1], [0], [0], [1], [0, 0, 1, 1], [], []>} : vector<16x32xbf16>, vector<32x32xbf16>, vector<16x32xf32> -> vector<16x32xf32>
    %81 = arith.truncf %50 : vector<16x16xf32> to vector<16x16xbf16>
    %82 = arith.truncf %80 : vector<16x32xf32> to vector<16x32xbf16>
    %cst_35 = arith.constant dense<0.000000e+00> : vector<16x32xf32>
    %83 = tpu.matmul %81, %82, %cst_35 {dimension_numbers = #tpu.dot_dimension_numbers<[1], [0], [0], [1], [0, 0, 1, 1], [], []>} : vector<16x16xbf16>, vector<16x32xbf16>, vector<16x32xf32> -> vector<16x32xf32>
    %c0_36 = arith.constant 0 : index
    %c0_37 = arith.constant 0 : index
    %84 = vector.load %arg12[%c0_36, %c0_37] : memref<1x32xf32, #tpu.memory_space<vmem>>, vector<1x32xf32>
    %85 = vector.broadcast %84 : vector<1x32xf32> to vector<16x32xf32>
    %86 = arith.addf %83, %85 : vector<16x32xf32>
    %cst_38 = arith.constant 0.000000e+00 : f32
    %87 = vector.broadcast %cst_38 : f32 to vector<16x32xf32>
    %88 = arith.maximumf %86, %87 : vector<16x32xf32>
    %c0_39 = arith.constant 0 : index
    %c0_40 = arith.constant 0 : index
    %c0_41 = arith.constant 0 : index
    %89 = vector.load %arg5[%c0_39, %c0_40, %c0_41] : memref<1x1x16xi32, #tpu.memory_space<vmem>>, vector<1x1x16xi32>
    %90 = vector.shape_cast %89 : vector<1x1x16xi32> to vector<1x16xi32>
    %91 = tpu.iota {dimensions = array<i32: 0>} : vector<2x16xi32>
    %92 = vector.broadcast %90 : vector<1x16xi32> to vector<2x16xi32>
    %93 = arith.cmpi eq, %91, %92 : vector<2x16xi32>
    %94 = arith.extui %93 : vector<2x16xi1> to vector<2x16xi32>
    %95 = arith.sitofp %94 : vector<2x16xi32> to vector<2x16xf32>
    %cst_42 = arith.constant dense<0.000000e+00> : vector<2xf32>
    %96 = vector.multi_reduction <add>, %95, %cst_42 [1] : vector<2x16xf32> to vector<2xf32>
    %97 = vector.shape_cast %96 : vector<2xf32> to vector<2x1xf32>
    %cst_43 = arith.constant 1.000000e+00 : f32
    %98 = vector.broadcast %cst_43 : f32 to vector<2x1xf32>
    %99 = arith.maximumf %97, %98 : vector<2x1xf32>
    %cst_44 = arith.constant dense<0.000000e+00> : vector<2x32xf32>
    %100 = tpu.matmul %95, %88, %cst_44 {dimension_numbers = #tpu.dot_dimension_numbers<[1], [0], [0], [1], [0, 0, 1, 1], [], []>} : vector<2x16xf32>, vector<16x32xf32>, vector<2x32xf32> -> vector<2x32xf32>
    %101 = vector.broadcast %99 : vector<2x1xf32> to vector<2x32xf32>
    %102 = arith.divf %100, %101 : vector<2x32xf32>
    %c0_45 = arith.constant 0 : index
    %c0_46 = arith.constant 0 : index
    %103 = vector.load %arg13[%c0_45, %c0_46] : memref<32x4xf32, #tpu.memory_space<vmem>>, vector<32x4xf32>
    %cst_47 = arith.constant dense<0.000000e+00> : vector<2x4xf32>
    %104 = tpu.matmul %102, %103, %cst_47 {dimension_numbers = #tpu.dot_dimension_numbers<[1], [0], [0], [1], [0, 0, 1, 1], [], []>} : vector<2x32xf32>, vector<32x4xf32>, vector<2x4xf32> -> vector<2x4xf32>
    %c0_48 = arith.constant 0 : index
    %c0_49 = arith.constant 0 : index
    %105 = vector.load %arg14[%c0_48, %c0_49] : memref<1x4xf32, #tpu.memory_space<vmem>>, vector<1x4xf32>
    %106 = vector.broadcast %105 : vector<1x4xf32> to vector<2x4xf32>
    %107 = arith.addf %104, %106 : vector<2x4xf32>
    %c0_50 = arith.constant 0 : index
    %c0_51 = arith.constant 0 : index
    %c0_52 = arith.constant 0 : index
    %108 = vector.load %arg15[%c0_50, %c0_51, %c0_52] : memref<1x2x4xf32, #tpu.memory_space<vmem>>, vector<1x2x4xf32>
    %109 = vector.shape_cast %108 : vector<1x2x4xf32> to vector<2x4xf32>
    %110 = vector.shape_cast %107 : vector<2x4xf32> to vector<1x2x4xf32>
    tpu.vector_store %arg15[%c0_50, %c0_51, %c0_52], %110 {strides = array<i32>} : memref<1x2x4xf32, #tpu.memory_space<vmem>>, vector<1x2x4xf32>,
    return
  }
  func.func @transform_0(%arg0: i32) -> (i32, i32, i32) {
    %c0_i32 = arith.constant 0 : i32
    %c0_i32_0 = arith.constant 0 : i32
    %c0_i32_1 = arith.constant 0 : i32
    return %arg0, %c0_i32, %c0_i32_0 : i32, i32, i32
  }
  func.func @transform_1(%arg0: i32) -> (i32, i32, i32) {
    %c0_i32 = arith.constant 0 : i32
    %c0_i32_0 = arith.constant 0 : i32
    %c0_i32_1 = arith.constant 0 : i32
    return %arg0, %c0_i32, %c0_i32_0 : i32, i32, i32
  }
  func.func @transform_2(%arg0: i32) -> (i32, i32, i32) {
    %c0_i32 = arith.constant 0 : i32
    %c0_i32_0 = arith.constant 0 : i32
    %c0_i32_1 = arith.constant 0 : i32
    return %arg0, %c0_i32, %c0_i32_0 : i32, i32, i32
  }
  func.func @transform_3(%arg0: i32) -> (i32, i32, i32) {
    %c0_i32 = arith.constant 0 : i32
    %c0_i32_0 = arith.constant 0 : i32
    %c0_i32_1 = arith.constant 0 : i32
    return %arg0, %c0_i32, %c0_i32_0 : i32, i32, i32
  }
  func.func @transform_4(%arg0: i32) -> (i32, i32, i32) {
    %c0_i32 = arith.constant 0 : i32
    %c0_i32_0 = arith.constant 0 : i32
    %c0_i32_1 = arith.constant 0 : i32
    return %arg0, %c0_i32, %c0_i32_0 : i32, i32, i32
  }
  func.func @transform_5(%arg0: i32) -> (i32, i32, i32) {
    %c0_i32 = arith.constant 0 : i32
    %c0_i32_0 = arith.constant 0 : i32
    %c0_i32_1 = arith.constant 0 : i32
    return %arg0, %c0_i32, %c0_i32_0 : i32, i32, i32
  }
  func.func @transform_6(%arg0: i32) -> (i32, i32) {
    %c0_i32 = arith.constant 0 : i32
    %c0_i32_0 = arith.constant 0 : i32
    %c0_i32_1 = arith.constant 0 : i32
    return %c0_i32, %c0_i32_0 : i32, i32
  }
  func.func @transform_7(%arg0: i32) -> (i32, i32) {
    %c0_i32 = arith.constant 0 : i32
    %c0_i32_0 = arith.constant 0 : i32
    %c0_i32_1 = arith.constant 0 : i32
    return %c0_i32, %c0_i32_0 : i32, i32
  }
  func.func @transform_8(%arg0: i32) -> (i32, i32) {
    %c0_i32 = arith.constant 0 : i32
    %c0_i32_0 = arith.constant 0 : i32
    %c0_i32_1 = arith.constant 0 : i32
    return %c0_i32, %c0_i32_0 : i32, i32
  }
  func.func @transform_9(%arg0: i32) -> (i32, i32) {
    %c0_i32 = arith.constant 0 : i32
    %c0_i32_0 = arith.constant 0 : i32
    %c0_i32_1 = arith.constant 0 : i32
    return %c0_i32, %c0_i32_0 : i32, i32
  }
  func.func @transform_10(%arg0: i32) -> (i32, i32) {
    %c0_i32 = arith.constant 0 : i32
    %c0_i32_0 = arith.constant 0 : i32
    %c0_i32_1 = arith.constant 0 : i32
    return %c0_i32, %c0_i32_0 : i32, i32
  }
  func.func @transform_11(%arg0: i32) -> (i32, i32) {
    %c0_i32 = arith.constant 0 : i32
    %c0_i32_0 = arith.constant 0 : i32
    %c0_i32_1 = arith.constant 0 : i32
    return %c0_i32, %c0_i32_0 : i32, i32
  }
  func.func @transform_12(%arg0: i32) -> (i32, i32) {
    %c0_i32 = arith.constant 0 : i32
    %c0_i32_0 = arith.constant 0 : i32
    %c0_i32_1 = arith.constant 0 : i32
    return %c0_i32, %c0_i32_0 : i32, i32
  }
  func.func @transform_13(%arg0: i32) -> (i32, i32) {
    %c0_i32 = arith.constant 0 : i32
    %c0_i32_0 = arith.constant 0 : i32
    %c0_i32_1 = arith.constant 0 : i32
    return %c0_i32, %c0_i32_0 : i32, i32
  }
  func.func @transform_14(%arg0: i32) -> (i32, i32, i32) {
    %c0_i32 = arith.constant 0 : i32
    %c0_i32_0 = arith.constant 0 : i32
    %c0_i32_1 = arith.constant 0 : i32
    return %arg0, %c0_i32, %c0_i32_0 : i32, i32, i32
  }
}

</mosaic_0001>

<llo_original>
// kernel: gcn_classifier_forward.1
$region0: #{gcn_classifier_forward.1}
  #allocation0 [shape = 'u32[]', space=smem, size = 0x4, offset = 0x4, fixed_abs, tag = 'smem constant byte address 0x4 - core index']
  #allocation1 [shape = 'u32[144,128]{1,0:T(1,128)}', space=vmem, size = 0x12000, scoped, tag = 'internal scratch']
  %s0 = inlined_call_operand.vmem [shape: s32[4,1,48], index: 0, kind: input, shape index: {}]
  %s1 = inlined_call_operand.vmem [shape: s32[4,48,1], index: 1, kind: input, shape index: {}]
  %s2 = inlined_call_operand.vmem [shape: s32[4,1,48], index: 2, kind: input, shape index: {}]
  %s3 = inlined_call_operand.vmem [shape: f32[4,1,48], index: 3, kind: input, shape index: {}]
  %s4 = inlined_call_operand.vmem [shape: s32[4,1,16], index: 4, kind: input, shape index: {}]
  %s5 = inlined_call_operand.vmem [shape: f32[4,16,8], index: 5, kind: input, shape index: {}]
  %s6 = inlined_call_operand.vmem [shape: f32[8,32], index: 6, kind: input, shape index: {}]
  %s7 = inlined_call_operand.vmem [shape: f32[1,32], index: 7, kind: input, shape index: {}]
  %s8 = inlined_call_operand.vmem [shape: f32[32,32], index: 8, kind: input, shape index: {}]
  %s9 = inlined_call_operand.vmem [shape: f32[1,32], index: 9, kind: input, shape index: {}]
  %s10 = inlined_call_operand.vmem [shape: f32[32,32], index: 10, kind: input, shape index: {}]
  %s11 = inlined_call_operand.vmem [shape: f32[1,32], index: 11, kind: input, shape index: {}]
  %s12 = inlined_call_operand.vmem [shape: f32[32,4], index: 12, kind: input, shape index: {}]
  %s13 = inlined_call_operand.vmem [shape: f32[1,4], index: 13, kind: input, shape index: {}]
  %s14 = inlined_call_operand.hbm [shape: f32[4,2,4], index: 14, kind: output, shape index: {}]
  %s15 = sld [smem:[#allocation0]]
  $region89: #{gcn_classifier_forward.1} parent=0
    _
  %s17 = ssub.s32 1, %s15
  %s18 = scalar_select 0, %s17, %s15
  $region1: #{gcn_classifier_forward.1} parent=0
    #allocation2 [shape = 'u8[2048]{0}', space=vmem, size = 0x800, scoped, tag = 'output window, operand 0']
    #allocation3 [shape = 's32[2]{0}', space=sflag, size = 0x8, scoped, tag = 'scoped memory for gcn_classifier_forward.1']
    %19 = vsyncpa [#allocation3], 0
    %s20 = scalar_lea.sflag [#allocation3], 1
    %21 = vsyncpa %s20, 0
    loop: start=0, step=1, limit=6
    $region2: #{gcn_classifier_forward.1} parent=1 // loop_pre_header
      _
    $region3: #{gcn_classifier_forward.1} parent=1 // loop_header
      %s23 = sphi 0, %s27
      %p24 = scmp.ge.s32.totalorder %s23, 6
      %s33 = sphi 0, %s35
      %s36 = sphi 0, %s33
      %s37 = sphi 0, %s36
      %s53 = sphi 0, %s37
      %s59 = sphi 0, %s61
      %s62 = sphi 0, %s59
      %s63 = sphi 0, %s62
      %s79 = sphi 0, %s63
      %s85 = sphi 0, %s87
      %s88 = sphi 0, %s85
      %s89 = sphi 0, %s88
      %s105 = sphi 0, %s89
      %s111 = sphi 0, %s113
      %s114 = sphi 0, %s111
      %s115 = sphi 0, %s114
      %s131 = sphi 0, %s115
      %s137 = sphi 0, %s139
      %s140 = sphi 0, %s137
      %s141 = sphi 0, %s140
      %s157 = sphi 0, %s141
      %s163 = sphi 0, %s165
      %s166 = sphi 0, %s163
      %s167 = sphi 0, %s166
      %s183 = sphi 0, %s167
      %s187 = sphi 0, %s187
      %s189 = sphi 0, %s187
      %s190 = sphi 0, %s189
      %s204 = sphi 0, %s190
      %s208 = sphi 0, %s208
      %s210 = sphi 0, %s208
      %s211 = sphi 0, %s210
      %s225 = sphi 0, %s211
      %s229 = sphi 0, %s229
      %s231 = sphi 0, %s229
      %s232 = sphi 0, %s231
      %s246 = sphi 0, %s232
      %s250 = sphi 0, %s250
      %s252 = sphi 0, %s250
      %s253 = sphi 0, %s252
      %s267 = sphi 0, %s253
      %s271 = sphi 0, %s271
      %s273 = sphi 0, %s271
      %s274 = sphi 0, %s273
      %s288 = sphi 0, %s274
      %s292 = sphi 0, %s292
      %s294 = sphi 0, %s292
      %s295 = sphi 0, %s294
      %s309 = sphi 0, %s295
      %s313 = sphi 0, %s313
      %s315 = sphi 0, %s313
      %s316 = sphi 0, %s315
      %s330 = sphi 0, %s316
      %s334 = sphi 0, %s334
      %s336 = sphi 0, %s334
      %s337 = sphi 0, %s336
      %s351 = sphi 0, %s337
      %s357 = sphi 0, %s359
      %s360 = sphi 0, %s357
      %s361 = sphi 0, %s360
      %s377 = sphi 0, %s361
    $region4: #{gcn_classifier_forward.1} parent=1 // loop_header_branch
      %26 = sbr.rel (%p24) target = $region8
    $region5: #{gcn_classifier_forward.1} parent=1 // loop_body
      %s28 = ssub.s32 %s23, 1
      %s29 = ssub.s32 %s23, 2
      %s30 = sadd.s32 %s23, 1
      %s31 = ssub.s32 %s23, %s30
      %p32 = scmp.eq.s32.totalorder %s31, 0
      %s34 = sadd.s32 %s33, 1
      %s35 = scalar_select %p32, %s33, %s34
      %p38 = pneg %p32
      %p39 = scmp.eq.s32.totalorder %s23, 3
      %p40 = por %p38, %p39
      %p41 = scmp.ne.s32.totalorder %s33, %s36
      %p42 = scmp.eq.s32.totalorder %s23, 0
      %p43 = por %p41, %p42
      %p44 = scmp.ne.s32.totalorder %s33, %s36
      %p45 = scmp.eq.s32.totalorder %s28, 3
      %p46 = por %p44, %p45
      %p47 = scmp.ne.s32.totalorder %s36, %s37
      %p48 = scmp.eq.s32.totalorder %s28, 0
      %p49 = por %p47, %p48
      %p50 = scmp.ne.s32.totalorder %s36, %s37
      %p51 = scmp.eq.s32.totalorder %s29, 3
      %p52 = por %p50, %p51
      %p54 = scmp.ne.s32.totalorder %s37, %s53
      %p55 = scmp.eq.s32.totalorder %s29, 0
      %p56 = por %p54, %p55
      %s57 = ssub.s32 %s23, %s30
      %p58 = scmp.eq.s32.totalorder %s57, 0
      %s60 = sadd.s32 %s59, 1
      %s61 = scalar_select %p58, %s59, %s60
      %p64 = pneg %p58
      %p65 = scmp.eq.s32.totalorder %s23, 3
      %p66 = por %p64, %p65
      %p67 = scmp.ne.s32.totalorder %s59, %s62
      %p68 = scmp.eq.s32.totalorder %s23, 0
      %p69 = por %p67, %p68
      %p70 = scmp.ne.s32.totalorder %s59, %s62
      %p71 = scmp.eq.s32.totalorder %s28, 3
      %p72 = por %p70, %p71
      %p73 = scmp.ne.s32.totalorder %s62, %s63
      %p74 = scmp.eq.s32.totalorder %s28, 0
      %p75 = por %p73, %p74
      %p76 = scmp.ne.s32.totalorder %s62, %s63
      %p77 = scmp.eq.s32.totalorder %s29, 3
      %p78 = por %p76, %p77
      %p80 = scmp.ne.s32.totalorder %s63, %s79
      %p81 = scmp.eq.s32.totalorder %s29, 0
      %p82 = por %p80, %p81
      %s83 = ssub.s32 %s23, %s30
      %p84 = scmp.eq.s32.totalorder %s83, 0
      %s86 = sadd.s32 %s85, 1
      %s87 = scalar_select %p84, %s85, %s86
      %p90 = pneg %p84
      %p91 = scmp.eq.s32.totalorder %s23, 3
      %p92 = por %p90, %p91
      %p93 = scmp.ne.s32.totalorder %s85, %s88
      %p94 = scmp.eq.s32.totalorder %s23, 0
      %p95 = por %p93, %p94
      %p96 = scmp.ne.s32.totalorder %s85, %s88
      %p97 = scmp.eq.s32.totalorder %s28, 3
      %p98 = por %p96, %p97
      %p99 = scmp.ne.s32.totalorder %s88, %s89
      %p100 = scmp.eq.s32.totalorder %s28, 0
      %p101 = por %p99, %p100
      %p102 = scmp.ne.s32.totalorder %s88, %s89
      %p103 = scmp.eq.s32.totalorder %s29, 3
      %p104 = por %p102, %p103
      %p106 = scmp.ne.s32.totalorder %s89, %s105
      %p107 = scmp.eq.s32.totalorder %s29, 0
      %p108 = por %p106, %p107
      %s109 = ssub.s32 %s23, %s30
      %p110 = scmp.eq.s32.totalorder %s109, 0
      %s112 = sadd.s32 %s111, 1
      %s113 = scalar_select %p110, %s111, %s112
      %p116 = pneg %p110
      %p117 = scmp.eq.s32.totalorder %s23, 3
      %p118 = por %p116, %p117
      %p119 = scmp.ne.s32.totalorder %s111, %s114
      %p120 = scmp.eq.s32.totalorder %s23, 0
      %p121 = por %p119, %p120
      %p122 = scmp.ne.s32.totalorder %s111, %s114
      %p123 = scmp.eq.s32.totalorder %s28, 3
      %p124 = por %p122, %p123
      %p125 = scmp.ne.s32.totalorder %s114, %s115
      %p126 = scmp.eq.s32.totalorder %s28, 0
      %p127 = por %p125, %p126
      %p128 = scmp.ne.s32.totalorder %s114, %s115
      %p129 = scmp.eq.s32.totalorder %s29, 3
      %p130 = por %p128, %p129
      %p132 = scmp.ne.s32.totalorder %s115, %s131
      %p133 = scmp.eq.s32.totalorder %s29, 0
      %p134 = por %p132, %p133
      %s135 = ssub.s32 %s23, %s30
      %p136 = scmp.eq.s32.totalorder %s135, 0
      %s138 = sadd.s32 %s137, 1
      %s139 = scalar_select %p136, %s137, %s138
      %p142 = pneg %p136
      %p143 = scmp.eq.s32.totalorder %s23, 3
      %p144 = por %p142, %p143
      %p145 = scmp.ne.s32.totalorder %s137, %s140
      %p146 = scmp.eq.s32.totalorder %s23, 0
      %p147 = por %p145, %p146
      %p148 = scmp.ne.s32.totalorder %s137, %s140
      %p149 = scmp.eq.s32.totalorder %s28, 3
      %p150 = por %p148, %p149
      %p151 = scmp.ne.s32.totalorder %s140, %s141
      %p152 = scmp.eq.s32.totalorder %s28, 0
      %p153 = por %p151, %p152
      %p154 = scmp.ne.s32.totalorder %s140, %s141
      %p155 = scmp.eq.s32.totalorder %s29, 3
      %p156 = por %p154, %p155
      %p158 = scmp.ne.s32.totalorder %s141, %s157
      %p159 = scmp.eq.s32.totalorder %s29, 0
      %p160 = por %p158, %p159
      %s161 = ssub.s32 %s23, %s30
      %p162 = scmp.eq.s32.totalorder %s161, 0
      %s164 = sadd.s32 %s163, 1
      %s165 = scalar_select %p162, %s163, %s164
      %p168 = pneg %p162
      %p169 = scmp.eq.s32.totalorder %s23, 3
      %p170 = por %p168, %p169
      %p171 = scmp.ne.s32.totalorder %s163, %s166
      %p172 = scmp.eq.s32.totalorder %s23, 0
      %p173 = por %p171, %p172
      %p174 = scmp.ne.s32.totalorder %s163, %s166
      %p175 = scmp.eq.s32.totalorder %s28, 3
      %p176 = por %p174, %p175
      %p177 = scmp.ne.s32.totalorder %s166, %s167
      %p178 = scmp.eq.s32.totalorder %s28, 0
      %p179 = por %p177, %p178
      %p180 = scmp.ne.s32.totalorder %s166, %s167
      %p181 = scmp.eq.s32.totalorder %s29, 3
      %p182 = por %p180, %p181
      %p184 = scmp.ne.s32.totalorder %s167, %s183
      %p185 = scmp.eq.s32.totalorder %s29, 0
      %p186 = por %p184, %p185
      %s188 = sadd.s32 %s187, 1
      %p191 = scmp.eq.s32.totalorder %s23, 3
      %p192 = scmp.ne.s32.totalorder %s187, %s189
      %p193 = scmp.eq.s32.totalorder %s23, 0
      %p194 = por %p192, %p193
      %p195 = scmp.ne.s32.totalorder %s187, %s189
      %p196 = scmp.eq.s32.totalorder %s28, 3
      %p197 = por %p195, %p196
      %p198 = scmp.ne.s32.totalorder %s189, %s190
      %p199 = scmp.eq.s32.totalorder %s28, 0
      %p200 = por %p198, %p199
      %p201 = scmp.ne.s32.totalorder %s189, %s190
      %p202 = scmp.eq.s32.totalorder %s29, 3
      %p203 = por %p201, %p202
      %p205 = scmp.ne.s32.totalorder %s190, %s204
      %p206 = scmp.eq.s32.totalorder %s29, 0
      %p207 = por %p205, %p206
      %s209 = sadd.s32 %s208, 1
      %p212 = scmp.eq.s32.totalorder %s23, 3
      %p213 = scmp.ne.s32.totalorder %s208, %s210
      %p214 = scmp.eq.s32.totalorder %s23, 0
      %p215 = por %p213, %p214
      %p216 = scmp.ne.s32.totalorder %s208, %s210
      %p217 = scmp.eq.s32.totalorder %s28, 3
      %p218 = por %p216, %p217
      %p219 = scmp.ne.s32.totalorder %s210, %s211
      %p220 = scmp.eq.s32.totalorder %s28, 0
      %p221 = por %p219, %p220
      %p222 = scmp.ne.s32.totalorder %s210, %s211
      %p223 = scmp.eq.s32.totalorder %s29, 3
      %p224 = por %p222, %p223
      %p226 = scmp.ne.s32.totalorder %s211, %s225
      %p227 = scmp.eq.s32.totalorder %s29, 0
      %p228 = por %p226, %p227
      %s230 = sadd.s32 %s229, 1
      %p233 = scmp.eq.s32.totalorder %s23, 3
      %p234 = scmp.ne.s32.totalorder %s229, %s231
      %p235 = scmp.eq.s32.totalorder %s23, 0
      %p236 = por %p234, %p235
      %p237 = scmp.ne.s32.totalorder %s229, %s231
      %p238 = scmp.eq.s32.totalorder %s28, 3
      %p239 = por %p237, %p238
      %p240 = scmp.ne.s32.totalorder %s231, %s232
      %p241 = scmp.eq.s32.totalorder %s28, 0
      %p242 = por %p240, %p241
      %p243 = scmp.ne.s32.totalorder %s231, %s232
      %p244 = scmp.eq.s32.totalorder %s29, 3
      %p245 = por %p243, %p244
      %p247 = scmp.ne.s32.totalorder %s232, %s246
      %p248 = scmp.eq.s32.totalorder %s29, 0
      %p249 = por %p247, %p248
      %s251 = sadd.s32 %s250, 1
      %p254 = scmp.eq.s32.totalorder %s23, 3
      %p255 = scmp.ne.s32.totalorder %s250, %s252
      %p256 = scmp.eq.s32.totalorder %s23, 0
      %p257 = por %p255, %p256
      %p258 = scmp.ne.s32.totalorder %s250, %s252
      %p259 = scmp.eq.s32.totalorder %s28, 3
      %p260 = por %p258, %p259
      %p261 = scmp.ne.s32.totalorder %s252, %s253
      %p262 = scmp.eq.s32.totalorder %s28, 0
      %p263 = por %p261, %p262
      %p264 = scmp.ne.s32.totalorder %s252, %s253
      %p265 = scmp.eq.s32.totalorder %s29, 3
      %p266 = por %p264, %p265
      %p268 = scmp.ne.s32.totalorder %s253, %s267
      %p269 = scmp.eq.s32.totalorder %s29, 0
      %p270 = por %p268, %p269
      %s272 = sadd.s32 %s271, 1
      %p275 = scmp.eq.s32.totalorder %s23, 3
      %p276 = scmp.ne.s32.totalorder %s271, %s273
      %p277 = scmp.eq.s32.totalorder %s23, 0
      %p278 = por %p276, %p277
      %p279 = scmp.ne.s32.totalorder %s271, %s273
      %p280 = scmp.eq.s32.totalorder %s28, 3
      %p281 = por %p279, %p280
      %p282 = scmp.ne.s32.totalorder %s273, %s274
      %p283 = scmp.eq.s32.totalorder %s28, 0
      %p284 = por %p282, %p283
      %p285 = scmp.ne.s32.totalorder %s273, %s274
      %p286 = scmp.eq.s32.totalorder %s29, 3
      %p287 = por %p285, %p286
      %p289 = scmp.ne.s32.totalorder %s274, %s288
      %p290 = scmp.eq.s32.totalorder %s29, 0
      %p291 = por %p289, %p290
      %s293 = sadd.s32 %s292, 1
      %p296 = scmp.eq.s32.totalorder %s23, 3
      %p297 = scmp.ne.s32.totalorder %s292, %s294
      %p298 = scmp.eq.s32.totalorder %s23, 0
      %p299 = por %p297, %p298
      %p300 = scmp.ne.s32.totalorder %s292, %s294
      %p301 = scmp.eq.s32.totalorder %s28, 3
      %p302 = por %p300, %p301
      %p303 = scmp.ne.s32.totalorder %s294, %s295
      %p304 = scmp.eq.s32.totalorder %s28, 0
      %p305 = por %p303, %p304
      %p306 = scmp.ne.s32.totalorder %s294, %s295
      %p307 = scmp.eq.s32.totalorder %s29, 3
      %p308 = por %p306, %p307
      %p310 = scmp.ne.s32.totalorder %s295, %s309
      %p311 = scmp.eq.s32.totalorder %s29, 0
      %p312 = por %p310, %p311
      %s314 = sadd.s32 %s313, 1
      %p317 = scmp.eq.s32.totalorder %s23, 3
      %p318 = scmp.ne.s32.totalorder %s313, %s315
      %p319 = scmp.eq.s32.totalorder %s23, 0
      %p320 = por %p318, %p319
      %p321 = scmp.ne.s32.totalorder %s313, %s315
      %p322 = scmp.eq.s32.totalorder %s28, 3
      %p323 = por %p321, %p322
      %p324 = scmp.ne.s32.totalorder %s315, %s316
      %p325 = scmp.eq.s32.totalorder %s28, 0
      %p326 = por %p324, %p325
      %p327 = scmp.ne.s32.totalorder %s315, %s316
      %p328 = scmp.eq.s32.totalorder %s29, 3
      %p329 = por %p327, %p328
      %p331 = scmp.ne.s32.totalorder %s316, %s330
      %p332 = scmp.eq.s32.totalorder %s29, 0
      %p333 = por %p331, %p332
      %s335 = sadd.s32 %s334, 1
      %p338 = scmp.eq.s32.totalorder %s23, 3
      %p339 = scmp.ne.s32.totalorder %s334, %s336
      %p340 = scmp.eq.s32.totalorder %s23, 0
      %p341 = por %p339, %p340
      %p342 = scmp.ne.s32.totalorder %s334, %s336
      %p343 = scmp.eq.s32.totalorder %s28, 3
      %p344 = por %p342, %p343
      %p345 = scmp.ne.s32.totalorder %s336, %s337
      %p346 = scmp.eq.s32.totalorder %s28, 0
      %p347 = por %p345, %p346
      %p348 = scmp.ne.s32.totalorder %s336, %s337
      %p349 = scmp.eq.s32.totalorder %s29, 3
      %p350 = por %p348, %p349
      %p352 = scmp.ne.s32.totalorder %s337, %s351
      %p353 = scmp.eq.s32.totalorder %s29, 0
      %p354 = por %p352, %p353
      %s355 = ssub.s32 %s23, %s30
      %p356 = scmp.eq.s32.totalorder %s355, 0
      %s358 = sadd.s32 %s357, 1
      %s359 = scalar_select %p356, %s357, %s358
      %p362 = pneg %p356
      %p363 = scmp.eq.s32.totalorder %s23, 3
      %p364 = por %p362, %p363
      %p365 = scmp.ne.s32.totalorder %s357, %s360
      %p366 = scmp.eq.s32.totalorder %s23, 0
      %p367 = por %p365, %p366
      %p368 = scmp.ne.s32.totalorder %s357, %s360
      %p369 = scmp.eq.s32.totalorder %s28, 3
      %p370 = por %p368, %p369
      %p371 = scmp.ne.s32.totalorder %s360, %s361
      %p372 = scmp.eq.s32.totalorder %s28, 0
      %p373 = por %p371, %p372
      %p374 = scmp.ne.s32.totalorder %s360, %s361
      %p375 = scmp.eq.s32.totalorder %s29, 3
      %p376 = por %p374, %p375
      %p378 = scmp.ne.s32.totalorder %s361, %s377
      %p379 = scmp.eq.s32.totalorder %s29, 0
      %p380 = por %p378, %p379
      %p381 = scmp.le.s32.totalorder 1, %s23
      %p382 = scmp.lt.s32.totalorder %s23, 5
      %p383 = pnand %p381, %p382
      %p384 = pneg %p383
      // Predicated region
      $region9: #{gcn_classifier_forward.1} parent=5 // pred_check
        _
      $region10: #{gcn_classifier_forward.1} parent=5 // pred_check_branch
        %386 = sbr.rel (%p383) target = $region12
      $region11: #{gcn_classifier_forward.1} parent=5 // pred_region
        %s387 = ssub.s32 %s23, 1
        // Predicated region
        $region13: #{gcn_classifier_forward.1} parent=11 // pred_check
          %p388 = pneg %p200
        $region14: #{gcn_classifier_forward.1} parent=11 // pred_check_branch
          %390 = sbr.rel (%p388) target = $region16
        $region15: #{gcn_classifier_forward.1} parent=11 // pred_region
          _
        $region16: #{gcn_classifier_forward.1} parent=11 // pred_fallthru
          _
        // Predicated region
        $region17: #{gcn_classifier_forward.1} parent=11 // pred_check
          %p391 = pneg %p221
        $region18: #{gcn_classifier_forward.1} parent=11 // pred_check_branch
          %393 = sbr.rel (%p391) target = $region20
        $region19: #{gcn_classifier_forward.1} parent=11 // pred_region
          _
        $region20: #{gcn_classifier_forward.1} parent=11 // pred_fallthru
          _
        // Predicated region
        $region21: #{gcn_classifier_forward.1} parent=11 // pred_check
          %p394 = pneg %p242
        $region22: #{gcn_classifier_forward.1} parent=11 // pred_check_branch
          %396 = sbr.rel (%p394) target = $region24
        $region23: #{gcn_classifier_forward.1} parent=11 // pred_region
          _
        $region24: #{gcn_classifier_forward.1} parent=11 // pred_fallthru
          _
        // Predicated region
        $region25: #{gcn_classifier_forward.1} parent=11 // pred_check
          %p397 = pneg %p263
        $region26: #{gcn_classifier_forward.1} parent=11 // pred_check_branch
          %399 = sbr.rel (%p397) target = $region28
        $region27: #{gcn_classifier_forward.1} parent=11 // pred_region
          _
        $region28: #{gcn_classifier_forward.1} parent=11 // pred_fallthru
          _
        // Predicated region
        $region29: #{gcn_classifier_forward.1} parent=11 // pred_check
          %p400 = pneg %p284
        $region30: #{gcn_classifier_forward.1} parent=11 // pred_check_branch
          %402 = sbr.rel (%p400) target = $region32
        $region31: #{gcn_classifier_forward.1} parent=11 // pred_region
          _
        $region32: #{gcn_classifier_forward.1} parent=11 // pred_fallthru
          _
        // Predicated region
        $region33: #{gcn_classifier_forward.1} parent=11 // pred_check
          %p403 = pneg %p305
        $region34: #{gcn_classifier_forward.1} parent=11 // pred_check_branch
          %405 = sbr.rel (%p403) target = $region36
        $region35: #{gcn_classifier_forward.1} parent=11 // pred_region
          _
        $region36: #{gcn_classifier_forward.1} parent=11 // pred_fallthru
          _
        // Predicated region
        $region37: #{gcn_classifier_forward.1} parent=11 // pred_check
          %p406 = pneg %p326
        $region38: #{gcn_classifier_forward.1} parent=11 // pred_check_branch
          %408 = sbr.rel (%p406) target = $region40
        $region39: #{gcn_classifier_forward.1} parent=11 // pred_region
          _
        $region40: #{gcn_classifier_forward.1} parent=11 // pred_fallthru
          _
        // Predicated region
        $region41: #{gcn_classifier_forward.1} parent=11 // pred_check
          %p409 = pneg %p347
        $region42: #{gcn_classifier_forward.1} parent=11 // pred_check_branch
          %411 = sbr.rel (%p409) target = $region44
        $region43: #{gcn_classifier_forward.1} parent=11 // pred_region
          _
        $region44: #{gcn_classifier_forward.1} parent=11 // pred_fallthru
          _
      $region12: #{gcn_classifier_forward.1} parent=5 // pred_fallthru
        _
      %p412 = scmp.lt.s32.totalorder %s23, 4
      // Predicated region
      $region45: #{gcn_classifier_forward.1} parent=5 // pred_check
        %p413 = pneg %p412
      $region46: #{gcn_classifier_forward.1} parent=5 // pred_check_branch
        %415 = sbr.rel (%p413) target = $region48
      $region47: #{gcn_classifier_forward.1} parent=5 // pred_region
        // Predicated region
        $region49: #{gcn_classifier_forward.1} parent=47 // pred_check
          %p416 = pneg %p43
        $region50: #{gcn_classifier_forward.1} parent=47 // pred_check_branch
          %418 = sbr.rel (%p416) target = $region52
        $region51: #{gcn_classifier_forward.1} parent=47 // pred_region
          %p419 = scmp.lt.s32.totalorder %s23, 3
          %s420 = scalar_select %p419, %s23, 3
          %s421 = scalar_lea.vmem %s0, %s420
        $region52: #{gcn_classifier_forward.1} parent=47 // pred_fallthru
          _
        // Predicated region
        $region53: #{gcn_classifier_forward.1} parent=47 // pred_check
          %p422 = pneg %p69
        $region54: #{gcn_classifier_forward.1} parent=47 // pred_check_branch
          %424 = sbr.rel (%p422) target = $region56
        $region55: #{gcn_classifier_forward.1} parent=47 // pred_region
          %p425 = scmp.lt.s32.totalorder %s23, 3
          %s426 = scalar_select %p425, %s23, 3
          %s427 = smul.addr %s426, 6
          %s428 = smul.addr %s427, 8
          %s429 = scalar_lea.vmem %s1, %s428
        $region56: #{gcn_classifier_forward.1} parent=47 // pred_fallthru
          _
        // Predicated region
        $region57: #{gcn_classifier_forward.1} parent=47 // pred_check
          %p430 = pneg %p95
        $region58: #{gcn_classifier_forward.1} parent=47 // pred_check_branch
          %432 = sbr.rel (%p430) target = $region60
        $region59: #{gcn_classifier_forward.1} parent=47 // pred_region
          %p433 = scmp.lt.s32.totalorder %s23, 3
          %s434 = scalar_select %p433, %s23, 3
          %s435 = scalar_lea.vmem %s2, %s434
        $region60: #{gcn_classifier_forward.1} parent=47 // pred_fallthru
          _
        // Predicated region
        $region61: #{gcn_classifier_forward.1} parent=47 // pred_check
          %p436 = pneg %p121
        $region62: #{gcn_classifier_forward.1} parent=47 // pred_check_branch
          %438 = sbr.rel (%p436) target = $region64
        $region63: #{gcn_classifier_forward.1} parent=47 // pred_region
          %p439 = scmp.lt.s32.totalorder %s23, 3
          %s440 = scalar_select %p439, %s23, 3
          %s441 = scalar_lea.vmem %s3, %s440
        $region64: #{gcn_classifier_forward.1} parent=47 // pred_fallthru
          _
        // Predicated region
        $region65: #{gcn_classifier_forward.1} parent=47 // pred_check
          %p442 = pneg %p147
        $region66: #{gcn_classifier_forward.1} parent=47 // pred_check_branch
          %444 = sbr.rel (%p442) target = $region68
        $region67: #{gcn_classifier_forward.1} parent=47 // pred_region
          %p445 = scmp.lt.s32.totalorder %s23, 3
          %s446 = scalar_select %p445, %s23, 3
          %s447 = scalar_lea.vmem %s4, %s446
        $region68: #{gcn_classifier_forward.1} parent=47 // pred_fallthru
          _
        // Predicated region
        $region69: #{gcn_classifier_forward.1} parent=47 // pred_check
          %p448 = pneg %p173
        $region70: #{gcn_classifier_forward.1} parent=47 // pred_check_branch
          %450 = sbr.rel (%p448) target = $region72
        $region71: #{gcn_classifier_forward.1} parent=47 // pred_region
          %p451 = scmp.lt.s32.totalorder %s23, 3
          %s452 = scalar_select %p451, %s23, 3
          %s453 = smul.addr %s452, 2
          %s454 = smul.addr %s453, 8
          %s455 = scalar_lea.vmem %s5, %s454
        $region72: #{gcn_classifier_forward.1} parent=47 // pred_fallthru
          _
      $region48: #{gcn_classifier_forward.1} parent=5 // pred_fallthru
        _
      %p456 = scmp.le.s32.totalorder 1, %s23
      %p457 = scmp.lt.s32.totalorder %s23, 5
      %p458 = pnand %p456, %p457
      %p459 = pneg %p458
      // Predicated region
      $region73: #{gcn_classifier_forward.1} parent=5 // pred_check
        _
      $region74: #{gcn_classifier_forward.1} parent=5 // pred_check_branch
        %461 = sbr.rel (%p458) target = $region76
      $region75: #{gcn_classifier_forward.1} parent=5 // pred_region
        %s462 = ssub.s32 %s23, 1
        %p463 = scmp.lt.s32.totalorder %s28, 3
        %s464 = scalar_select %p463, %s28, 3
        %s465 = scalar_lea.vmem %s0, %s464
        %p466 = pneg %p49
        %p467 = pneg %p46
        %p468 = scmp.lt.s32.totalorder %s28, 3
        %s469 = scalar_select %p468, %s28, 3
        %s470 = smul.addr %s469, 6
        %s471 = smul.addr %s470, 8
        %s472 = scalar_lea.vmem %s1, %s471
        %p473 = pneg %p75
        %p474 = pneg %p72
        %p475 = scmp.lt.s32.totalorder %s28, 3
        %s476 = scalar_select %p475, %s28, 3
        %s477 = scalar_lea.vmem %s2, %s476
        %p478 = pneg %p101
        %p479 = pneg %p98
        %p480 = scmp.lt.s32.totalorder %s28, 3
        %s481 = scalar_select %p480, %s28, 3
        %s482 = scalar_lea.vmem %s3, %s481
        %p483 = pneg %p127
        %p484 = pneg %p124
        %p485 = scmp.lt.s32.totalorder %s28, 3
        %s486 = scalar_select %p485, %s28, 3
        %s487 = scalar_lea.vmem %s4, %s486
        %p488 = pneg %p153
        %p489 = pneg %p150
        %p490 = scmp.lt.s32.totalorder %s28, 3
        %s491 = scalar_select %p490, %s28, 3
        %s492 = smul.addr %s491, 2
        %s493 = smul.addr %s492, 8
        %s494 = scalar_lea.vmem %s5, %s493
        %p495 = pneg %p179
        %p496 = pneg %p176
        %p497 = pneg %p200
        %p498 = pneg %p197
        %p499 = pneg %p221
        %p500 = pneg %p218
        %p501 = pneg %p242
        %p502 = pneg %p239
        %p503 = pneg %p263
        %p504 = pneg %p260
        %p505 = pneg %p284
        %p506 = pneg %p281
        %p507 = pneg %p305
        %p508 = pneg %p302
        %p509 = pneg %p326
        %p510 = pneg %p323
        %p511 = pneg %p347
        %p512 = pneg %p344
        %p513 = pneg %p373
        %p514 = pneg %p370
        %s515 = sand.u32 %s360, 1
        %s516 = scalar_lea.sflag [#allocation3], %s515
        %s517 = sand.u32 %s360, 1
        %s518 = smul.addr %s517, 2
        %s519 = scalar_lea.vmem [#allocation2], %s518
        %p520 = scmp.lt.s32.totalorder %s28, 3
        %s521 = scalar_select %p520, %s28, 3
        %s522 = scalar_lea.vmem %s0, %s521
        %p523 = scmp.lt.s32.totalorder %s28, 3
        %s524 = scalar_select %p523, %s28, 3
        %s525 = smul.addr %s524, 6
        %s526 = smul.addr %s525, 8
        %s527 = scalar_lea.vmem %s1, %s526
        %p528 = scmp.lt.s32.totalorder %s28, 3
        %s529 = scalar_select %p528, %s28, 3
        %s530 = scalar_lea.vmem %s2, %s529
        %p531 = scmp.lt.s32.totalorder %s28, 3
        %s532 = scalar_select %p531, %s28, 3
        %s533 = scalar_lea.vmem %s3, %s532
        %p534 = scmp.lt.s32.totalorder %s28, 3
        %s535 = scalar_select %p534, %s28, 3
        %s536 = scalar_lea.vmem %s4, %s535
        %p537 = scmp.lt.s32.totalorder %s28, 3
        %s538 = scalar_select %p537, %s28, 3
        %s539 = smul.addr %s538, 2
        %s540 = smul.addr %s539, 8
        %s541 = scalar_lea.vmem %s5, %s540
        %v543 = vld [vmem:[%s522] sm:$0x1]
        %v544 = vld [vmem:[%s527] sm:$0xff]
        %v545 = vld [vmem:[%s527 + $0x8] sm:$0xff]
        %v546 = vld [vmem:[%s527 + $0x10] sm:$0xff]
        %v547 = vld [vmem:[%s527 + $0x18] sm:$0xff]
        %v548 = vld [vmem:[%s527 + $0x20] sm:$0xff]
        %v549 = vld [vmem:[%s527 + $0x28] sm:$0xff]
        %v550 = vld [vmem:[%s530] sm:$0x1]
        %v551 = vld [vmem:[%s533] sm:$0x1]
        %v552 = vlaneseq
        %v553 = vshrl.u32 %v552, 7
        %v554 = vadd.s32 %v553, 8
        %v555 = vlaneseq
        %v556 = vshrl.u32 %v555, 7
        %v557 = vsub.s32 0, %v556
        %v558 = vrot.slane %v550, %v557
        %vm559 = vcmp.eq.s32.totalorder %v553, %v558
        %vm560 = vcmp.eq.s32.totalorder %v554, %v558
        %v561 = vsel %vm559, 1, 0
        %v562 = vsel %vm560, 1, 0
        %v563 = vcvt.s32.f32 %v561
        %v564 = vcvt.s32.f32 %v562
        %v565 = vlaneseq
        %v566 = vshrl.u32 %v565, 7
        %v567 = vsub.s32 0, %v566
        %v568 = vrot.slane %v543, %v567
        %vm569 = vcmp.eq.s32.totalorder %v553, %v568
        %vm570 = vcmp.eq.s32.totalorder %v554, %v568
        %v571 = vsel %vm569, 1, 0
        %v572 = vsel %vm570, 1, 0
        %v573 = vcvt.s32.f32 %v571
        %v574 = vcvt.s32.f32 %v572
        %v576 = vlaneseq
        %v577 = vshrl.u32 %v576, 7
        %v578 = vsub.s32 0, %v577
        %v579 = vrot.slane %v551, %v578
        %v581 = vmul.f32 %v563, %v579
        %v582 = vmul.f32 %v564, %v579
        %vm583 = vcmask 392192
        %v584 = vsel %vm583, %v581, 0.0
        %585 = vadd.xlane.f32.xlu0 %v584
        %v586 = vpop.xlane.xlu0 %585
        %v587 = vsel %vm583, %v582, 0.0
        %588 = vadd.xlane.f32.xlu0 %v587
        %v589 = vpop.xlane.xlu0 %588
        %v590 = vadd.f32 %v586, 1.0
        %v591 = vadd.f32 %v589, 1.0
        %v592 = vrsqrt.pop %v590
        %v593 = vrsqrt.pop %v591
        %v594 = vmul.f32 %v563, %v592
        %v595 = vmul.f32 %v564, %v593
        %v596 = vsel %vm583, %v594, 0.0
        %v597 = vsel %vm583, %v595, 0.0
        %v598 = vadd.f32 %v596, %v597
        %v599 = vrot.slane %v598, 4
        %v600 = vadd.f32 %v598, %v599
        %v601 = vrot.slane %v600, 2
        %v602 = vadd.f32 %v600, %v601
        %v603 = vrot.slane %v602, 1
        %v604 = vadd.f32 %v602, %v603
        %v605 = vmul.f32 %v573, %v592
        %v606 = vmul.f32 %v574, %v593
        %v607 = vsel %vm583, %v605, 0.0
        %v608 = vsel %vm583, %v606, 0.0
        %v609 = vadd.f32 %v607, %v608
        %v610 = vrot.slane %v609, 4
        %v611 = vadd.f32 %v609, %v610
        %v612 = vrot.slane %v611, 2
        %v613 = vadd.f32 %v611, %v612
        %v614 = vrot.slane %v613, 1
        %v615 = vadd.f32 %v613, %v614
        %v616 = vmul.f32 %v604, %v551
        %v617 = vmul.f32 %v616, %v615
        %v618 = vlaneseq
        %v619 = vand.u32 %v618, 127
        %620 = vset.pattern.permute.xlu0 0
        %621 = vperm.xlu0 %620, %v544
        %v622 = vpop.permute.xlu0 %621
        %623 = vset.pattern.permute.xlu0 0
        %624 = vperm.xlu0 %623, %v545
        %v625 = vpop.permute.xlu0 %624
        %626 = vset.pattern.permute.xlu0 0
        %627 = vperm.xlu0 %626, %v546
        %v628 = vpop.permute.xlu0 %627
        %629 = vset.pattern.permute.xlu0 0
        %630 = vperm.xlu0 %629, %v547
        %v631 = vpop.permute.xlu0 %630
        %632 = vset.pattern.permute.xlu0 0
        %633 = vperm.xlu0 %632, %v548
        %v634 = vpop.permute.xlu0 %633
        %635 = vset.pattern.permute.xlu0 0
        %636 = vperm.xlu0 %635, %v549
        %v637 = vpop.permute.xlu0 %636
        %vm638 = vcmp.eq.s32.totalorder %v619, %v622
        %vm639 = vcmp.eq.s32.totalorder %v619, %v625
        %vm640 = vcmp.eq.s32.totalorder %v619, %v628
        %vm641 = vcmp.eq.s32.totalorder %v619, %v631
        %vm642 = vcmp.eq.s32.totalorder %v619, %v634
        %vm643 = vcmp.eq.s32.totalorder %v619, %v637
        %v644 = vsel %vm638, 1, 0
        %v645 = vsel %vm639, 1, 0
        %v646 = vsel %vm640, 1, 0
        %v647 = vsel %vm641, 1, 0
        %v648 = vsel %vm642, 1, 0
        %v649 = vsel %vm643, 1, 0
        %v650 = vcvt.s32.f32 %v644
        %v651 = vcvt.s32.f32 %v645
        %v652 = vcvt.s32.f32 %v646
        %v653 = vcvt.s32.f32 %v647
        %v654 = vcvt.s32.f32 %v648
        %v655 = vcvt.s32.f32 %v649
        %v656 = vlaneseq
        %v657 = vshrl.u32 %v656, 7
        %v658 = vsub.s32 0, %v657
        %v659 = vrot.slane %v617, %v658
        %v660 = vmul.f32 %v563, %v659
        %v661 = vmul.f32 %v564, %v659
        %vm662 = vcmp.eq.s32.totalorder %v553, %v619
        %vm663 = vcmp.eq.s32.totalorder %v554, %v619
        %v664 = vsel %vm662, 1, 0
        %v665 = vsel %vm663, 1, 0
        %v666 = vcvt.s32.f32 %v664
        %v667 = vcvt.s32.f32 %v665
        %v668 = vmul.f32 %v592, %v592
        %v669 = vmul.f32 %v593, %v593
        %v670 = vmul.f32 %v666, %v668
        %v671 = vmul.f32 %v667, %v669
        %v673 = vsel %vm583, %v660, 0
        %v676 = vsel %vm583, %v661, 0
        %678 = vmatprep.subr.mxu0 0.0
        %679 = vmatpush1.msra.mxu0 0.0
        %680 = vmatprep.subr.mxu0 0.0
        %681 = vmatpush1.msra.mxu0 0.0
        %682 = vmatprep.subr.mxu0 0.0
        %683 = vmatpush1.msra.mxu0 0.0
        %684 = vmatprep.subr.mxu0 0.0
        %685 = vmatpush1.msra.mxu0 0.0
        %686 = vmatprep.subr.mxu0 0.0
        %687 = vmatpush1.msra.mxu0 0.0
        %688 = vmatprep.subr.mxu0 0.0
        %689 = vmatpush1.msra.mxu0 0.0
        %690 = vmatprep.subr.mxu0 0.0
        %691 = vmatpush1.msra.mxu0 0.0
        %692 = vmatprep.subr.mxu0 0.0
        %693 = vmatpush1.msra.mxu0 0.0
        %694 = vmatprep.subr.mxu0 0.0
        %695 = vmatpush1.msra.mxu0 0.0
        %696 = vmatprep.subr.mxu0 0.0
        %697 = vmatpush1.msra.mxu0 0.0
        %698 = vmatprep.subr.mxu0 0.0
        %699 = vmatpush1.msra.mxu0 %v655
        %700 = vmatprep.subr.mxu0 0.0
        %701 = vmatpush1.msra.mxu0 %v654
        %702 = vmatprep.subr.mxu0 0.0
        %703 = vmatpush1.msra.mxu0 %v653
        %704 = vmatprep.subr.mxu0 0.0
        %705 = vmatpush1.msra.mxu0 %v652
        %706 = vmatprep.subr.mxu0 0.0
        %707 = vmatpush1.msra.mxu0 %v651
        %708 = vmatprep.subr.mxu0 0.0
        %709 = vmatpush1.msra.mxu0 %v650
        %710 = vmatprep.subr.mxu0 0.0
        %711 = vmatpush2.msra.mxu0 0.0
        %712 = vmatprep.subr.mxu0 0.0
        %713 = vmatpush2.msra.mxu0 0.0
        %714 = vmatprep.subr.mxu0 0.0
        %715 = vmatpush2.msra.mxu0 0.0
        %716 = vmatprep.subr.mxu0 0.0
        %717 = vmatpush2.msra.mxu0 0.0
        %718 = vmatprep.subr.mxu0 0.0
        %719 = vmatpush2.msra.mxu0 0.0
        %720 = vmatprep.subr.mxu0 0.0
        %721 = vmatpush2.msra.mxu0 0.0
        %722 = vmatprep.subr.mxu0 0.0
        %723 = vmatpush2.msra.mxu0 0.0
        %724 = vmatprep.subr.mxu0 0.0
        %725 = vmatpush2.msra.mxu0 0.0
        %726 = vmatprep.subr.mxu0 0.0
        %727 = vmatpush2.msra.mxu0 0.0
        %728 = vmatprep.subr.mxu0 0.0
        %729 = vmatpush2.msra.mxu0 0.0
        %730 = vmatprep.subr.mxu0 0.0
        %731 = vmatpush2.msra.mxu0 0.0
        %732 = vmatprep.subr.mxu0 0.0
        %733 = vmatpush2.msra.mxu0 0.0
        %734 = vmatprep.subr.mxu0 0.0
        %735 = vmatpush2.msra.mxu0 0.0
        %736 = vmatprep.subr.mxu0 0.0
        %737 = vmatpush2.msra.mxu0 0.0
        %738 = vmatprep.subr.mxu0 0.0
        %739 = vmatpush2.msra.mxu0 0.0
        %740 = vmatprep.subr.mxu0 0.0
        %741 = vmatpush2.msra.mxu0 0.0
        %742 = vmatprep.mubr.f32.mxu0 0.0
        %743 = vmatmul.mubr.f32.gmra.mxu0 %v673
        %v744 = vpop.f32.mrf.mxu0
        %v745 = vadd.f32 %v670, %v744
        %v746 = vpop.f32.mrf.mxu0
        %747 = vmatprep.mubr.f32.mxu0 0.0
        %748 = vmatmul.mubr.f32.gmra.mxu0 %v676
        %v749 = vpop.f32.mrf.mxu0
        %v750 = vadd.f32 %v671, %v749
        %v751 = vpop.f32.mrf.mxu0
        %752 = vdwg.mxu0
        %v753 = vld [vmem:[%s541] sm:$0xff]
        %v754 = vld [vmem:[%s541 + $0x8] sm:$0xff]
        %v755 = vld [vmem:[%s6] sm:$0xff]
        %v756 = vpack.c.bf16 %v754, %v753
        %v757 = vpack.c.bf16 %v755, %v755
        %vm758 = vcmask 64512
        %v760 = vsel %vm758, %v756, 0
        %vm762 = vcmask 1043456
        %v764 = vsel %vm762, %v757, 0
        %766 = vmatprep.subr.bf16.mxu0 0
        %767 = vmatpush1.bf16.msra.mxu0 0
        %768 = vmatprep.subr.bf16.mxu0 0
        %769 = vmatpush1.bf16.msra.mxu0 0
        %770 = vmatprep.subr.bf16.mxu0 0
        %771 = vmatpush1.bf16.msra.mxu0 0
        %772 = vmatprep.subr.bf16.mxu0 0
        %773 = vmatpush1.bf16.msra.mxu0 0
        %774 = vmatprep.subr.bf16.mxu0 0
        %775 = vmatpush1.bf16.msra.mxu0 0
        %776 = vmatprep.subr.bf16.mxu0 0
        %777 = vmatpush1.bf16.msra.mxu0 0
        %778 = vmatprep.subr.bf16.mxu0 0
        %779 = vmatpush1.bf16.msra.mxu0 0
        %780 = vmatprep.subr.bf16.mxu0 0
        %781 = vmatpush1.bf16.msra.mxu0 %v764
        %782 = vmatprep.subr.bf16.mxu0 0
        %783 = vmatpush2.bf16.msra.mxu0 0
        %784 = vmatprep.subr.bf16.mxu0 0
        %785 = vmatpush2.bf16.msra.mxu0 0
        %786 = vmatprep.subr.bf16.mxu0 0
        %787 = vmatpush2.bf16.msra.mxu0 0
        %788 = vmatprep.subr.bf16.mxu0 0
        %789 = vmatpush2.bf16.msra.mxu0 0
        %790 = vmatprep.subr.bf16.mxu0 0
        %791 = vmatpush2.bf16.msra.mxu0 0
        %792 = vmatprep.subr.bf16.mxu0 0
        %793 = vmatpush2.bf16.msra.mxu0 0
        %794 = vmatprep.subr.bf16.mxu0 0
        %795 = vmatpush2.bf16.msra.mxu0 0
        %796 = vmatprep.subr.bf16.mxu0 0
        %797 = vmatpush2.bf16.msra.mxu0 0
        %798 = vmatprep.mubr.bf16.mxu0 0
        %799 = vmatmul.mubr.bf16.gmra.mxu0 %v760
        %v800 = vpop.f32.mrf.mxu0
        %v801 = vadd.f32 0.0, %v800
        %v802 = vpop.f32.mrf.mxu0
        %v803 = vpop.f32.mrf.mxu0
        %v804 = vadd.f32 0.0, %v803
        %v805 = vpop.f32.mrf.mxu0
        %806 = vdwg.mxu0
        %v807 = vpack.c.bf16 %v750, %v745
        %v808 = vpack.c.bf16 %v804, %v801
        %v809 = vld [vmem:[%s7] sm:$0x1]
        %v811 = vlaneseq
        %v812 = vshrl.u32 %v811, 7
        %v813 = vsub.s32 0, %v812
        %v814 = vrot.slane %v809, %v813
        %vm816 = vcmask 130048
        %v818 = vsel %vm816, %v807, 0
        %820 = vmatprep.subr.bf16.mxu0 0
        %821 = vmatpush1.bf16.msra.mxu0 0
        %822 = vmatprep.subr.bf16.mxu0 0
        %823 = vmatpush1.bf16.msra.mxu0 0
        %824 = vmatprep.subr.bf16.mxu0 0
        %825 = vmatpush1.bf16.msra.mxu0 0
        %826 = vmatprep.subr.bf16.mxu0 0
        %827 = vmatpush1.bf16.msra.mxu0 0
        %828 = vmatprep.subr.bf16.mxu0 0
        %829 = vmatpush1.bf16.msra.mxu0 0
        %830 = vmatprep.subr.bf16.mxu0 0
        %831 = vmatpush1.bf16.msra.mxu0 0
        %832 = vmatprep.subr.bf16.mxu0 0
        %833 = vmatpush1.bf16.msra.mxu0 0
        %834 = vmatprep.subr.bf16.mxu0 0
        %835 = vmatpush1.bf16.msra.mxu0 %v808
        %836 = vmatprep.subr.bf16.mxu0 0
        %837 = vmatpush2.bf16.msra.mxu0 0
        %838 = vmatprep.subr.bf16.mxu0 0
        %839 = vmatpush2.bf16.msra.mxu0 0
        %840 = vmatprep.subr.bf16.mxu0 0
        %841 = vmatpush2.bf16.msra.mxu0 0
        %842 = vmatprep.subr.bf16.mxu0 0
        %843 = vmatpush2.bf16.msra.mxu0 0
        %844 = vmatprep.subr.bf16.mxu0 0
        %845 = vmatpush2.bf16.msra.mxu0 0
        %846 = vmatprep.subr.bf16.mxu0 0
        %847 = vmatpush2.bf16.msra.mxu0 0
        %848 = vmatprep.subr.bf16.mxu0 0
        %849 = vmatpush2.bf16.msra.mxu0 0
        %850 = vmatprep.subr.bf16.mxu0 0
        %851 = vmatpush2.bf16.msra.mxu0 0
        %852 = vmatprep.mubr.bf16.mxu0 0
        %853 = vmatmul.mubr.bf16.gmra.mxu0 %v818
        %v854 = vpop.f32.mrf.mxu0
        %v855 = vadd.f32 %v814, %v854
        %v856 = vpop.f32.mrf.mxu0
        %v857 = vpop.f32.mrf.mxu0
        %v858 = vadd.f32 %v814, %v857
        %v859 = vpop.f32.mrf.mxu0
        %860 = vdwg.mxu0
        %v861 = vmax.f32 %v855, 0.0
        %v862 = vmax.f32 %v858, 0.0
        %v863 = vld [vmem:[%s8] sm:$0xff]
        %v864 = vld [vmem:[%s8 + $0x8] sm:$0xff]
        %v865 = vld [vmem:[%s8 + $0x10] sm:$0xff]
        %v866 = vld [vmem:[%s8 + $0x18] sm:$0xff]
        %v867 = vpack.c.bf16 %v862, %v861
        %v868 = vpack.c.bf16 %v864, %v863
        %v869 = vpack.c.bf16 %v866, %v865
        %vm870 = vcmask 261120
        %v872 = vsel %vm870, %v867, 0
        %874 = vmatprep.subr.bf16.mxu0 0
        %875 = vmatpush1.bf16.msra.mxu0 0
        %876 = vmatprep.subr.bf16.mxu0 0
        %877 = vmatpush1.bf16.msra.mxu0 0
        %878 = vmatprep.subr.bf16.mxu0 0
        %879 = vmatpush1.bf16.msra.mxu0 0
        %880 = vmatprep.subr.bf16.mxu0 0
        %881 = vmatpush1.bf16.msra.mxu0 0
        %882 = vmatprep.subr.bf16.mxu0 0
        %883 = vmatpush1.bf16.msra.mxu0 0
        %884 = vmatprep.subr.bf16.mxu0 0
        %885 = vmatpush1.bf16.msra.mxu0 0
        %886 = vmatprep.subr.bf16.mxu0 0
        %887 = vmatpush1.bf16.msra.mxu0 %v869
        %888 = vmatprep.subr.bf16.mxu0 0
        %889 = vmatpush1.bf16.msra.mxu0 %v868
        %890 = vmatprep.subr.bf16.mxu0 0
        %891 = vmatpush2.bf16.msra.mxu0 0
        %892 = vmatprep.subr.bf16.mxu0 0
        %893 = vmatpush2.bf16.msra.mxu0 0
        %894 = vmatprep.subr.bf16.mxu0 0
        %895 = vmatpush2.bf16.msra.mxu0 0
        %896 = vmatprep.subr.bf16.mxu0 0
        %897 = vmatpush2.bf16.msra.mxu0 0
        %898 = vmatprep.subr.bf16.mxu0 0
        %899 = vmatpush2.bf16.msra.mxu0 0
        %900 = vmatprep.subr.bf16.mxu0 0
        %901 = vmatpush2.bf16.msra.mxu0 0
        %902 = vmatprep.subr.bf16.mxu0 0
        %903 = vmatpush2.bf16.msra.mxu0 0
        %904 = vmatprep.subr.bf16.mxu0 0
        %905 = vmatpush2.bf16.msra.mxu0 0
        %906 = vmatprep.mubr.bf16.mxu0 0
        %907 = vmatmul.mubr.bf16.gmra.mxu0 %v872
        %v908 = vpop.f32.mrf.mxu0
        %v909 = vadd.f32 0.0, %v908
        %v910 = vpop.f32.mrf.mxu0
        %v911 = vpop.f32.mrf.mxu0
        %v912 = vadd.f32 0.0, %v911
        %v913 = vpop.f32.mrf.mxu0
        %914 = vdwg.mxu0
        %v915 = vpack.c.bf16 %v912, %v909
        %v916 = vld [vmem:[%s9] sm:$0x1]
        %v918 = vlaneseq
        %v919 = vshrl.u32 %v918, 7
        %v920 = vsub.s32 0, %v919
        %v921 = vrot.slane %v916, %v920
        %923 = vmatprep.subr.bf16.mxu0 0
        %924 = vmatpush1.bf16.msra.mxu0 0
        %925 = vmatprep.subr.bf16.mxu0 0
        %926 = vmatpush1.bf16.msra.mxu0 0
        %927 = vmatprep.subr.bf16.mxu0 0
        %928 = vmatpush1.bf16.msra.mxu0 0
        %929 = vmatprep.subr.bf16.mxu0 0
        %930 = vmatpush1.bf16.msra.mxu0 0
        %931 = vmatprep.subr.bf16.mxu0 0
        %932 = vmatpush1.bf16.msra.mxu0 0
        %933 = vmatprep.subr.bf16.mxu0 0
        %934 = vmatpush1.bf16.msra.mxu0 0
        %935 = vmatprep.subr.bf16.mxu0 0
        %936 = vmatpush1.bf16.msra.mxu0 0
        %937 = vmatprep.subr.bf16.mxu0 0
        %938 = vmatpush1.bf16.msra.mxu0 %v915
        %939 = vmatprep.subr.bf16.mxu0 0
        %940 = vmatpush2.bf16.msra.mxu0 0
        %941 = vmatprep.subr.bf16.mxu0 0
        %942 = vmatpush2.bf16.msra.mxu0 0
        %943 = vmatprep.subr.bf16.mxu0 0
        %944 = vmatpush2.bf16.msra.mxu0 0
        %945 = vmatprep.subr.bf16.mxu0 0
        %946 = vmatpush2.bf16.msra.mxu0 0
        %947 = vmatprep.subr.bf16.mxu0 0
        %948 = vmatpush2.bf16.msra.mxu0 0
        %949 = vmatprep.subr.bf16.mxu0 0
        %950 = vmatpush2.bf16.msra.mxu0 0
        %951 = vmatprep.subr.bf16.mxu0 0
        %952 = vmatpush2.bf16.msra.mxu0 0
        %953 = vmatprep.subr.bf16.mxu0 0
        %954 = vmatpush2.bf16.msra.mxu0 0
        %955 = vmatprep.mubr.bf16.mxu0 0
        %956 = vmatmul.mubr.bf16.gmra.mxu0 %v818
        %v957 = vpop.f32.mrf.mxu0
        %v958 = vadd.f32 %v921, %v957
        %v959 = vpop.f32.mrf.mxu0
        %v960 = vpop.f32.mrf.mxu0
        %v961 = vadd.f32 %v921, %v960
        %v962 = vpop.f32.mrf.mxu0
        %963 = vdwg.mxu0
        %v964 = vmax.f32 %v958, 0.0
        %v965 = vmax.f32 %v961, 0.0
        %v966 = vld [vmem:[%s10] sm:$0xff]
        %v967 = vld [vmem:[%s10 + $0x8] sm:$0xff]
        %v968 = vld [vmem:[%s10 + $0x10] sm:$0xff]
        %v969 = vld [vmem:[%s10 + $0x18] sm:$0xff]
        %v970 = vpack.c.bf16 %v965, %v964
        %v971 = vpack.c.bf16 %v967, %v966
        %v972 = vpack.c.bf16 %v969, %v968
        %v974 = vsel %vm870, %v970, 0
        %976 = vmatprep.subr.bf16.mxu0 0
        %977 = vmatpush1.bf16.msra.mxu0 0
        %978 = vmatprep.subr.bf16.mxu0 0
        %979 = vmatpush1.bf16.msra.mxu0 0
        %980 = vmatprep.subr.bf16.mxu0 0
        %981 = vmatpush1.bf16.msra.mxu0 0
        %982 = vmatprep.subr.bf16.mxu0 0
        %983 = vmatpush1.bf16.msra.mxu0 0
        %984 = vmatprep.subr.bf16.mxu0 0
        %985 = vmatpush1.bf16.msra.mxu0 0
        %986 = vmatprep.subr.bf16.mxu0 0
        %987 = vmatpush1.bf16.msra.mxu0 0
        %988 = vmatprep.subr.bf16.mxu0 0
        %989 = vmatpush1.bf16.msra.mxu0 %v972
        %990 = vmatprep.subr.bf16.mxu0 0
        %991 = vmatpush1.bf16.msra.mxu0 %v971
        %992 = vmatprep.subr.bf16.mxu0 0
        %993 = vmatpush2.bf16.msra.mxu0 0
        %994 = vmatprep.subr.bf16.mxu0 0
        %995 = vmatpush2.bf16.msra.mxu0 0
        %996 = vmatprep.subr.bf16.mxu0 0
        %997 = vmatpush2.bf16.msra.mxu0 0
        %998 = vmatprep.subr.bf16.mxu0 0
        %999 = vmatpush2.bf16.msra.mxu0 0
        %1000 = vmatprep.subr.bf16.mxu0 0
        %1001 = vmatpush2.bf16.msra.mxu0 0
        %1002 = vmatprep.subr.bf16.mxu0 0
        %1003 = vmatpush2.bf16.msra.mxu0 0
        %1004 = vmatprep.subr.bf16.mxu0 0
        %1005 = vmatpush2.bf16.msra.mxu0 0
        %1006 = vmatprep.subr.bf16.mxu0 0
        %1007 = vmatpush2.bf16.msra.mxu0 0
        %1008 = vmatprep.mubr.bf16.mxu0 0
        %1009 = vmatmul.mubr.bf16.gmra.mxu0 %v974
        %v1010 = vpop.f32.mrf.mxu0
        %v1011 = vadd.f32 0.0, %v1010
        %v1012 = vpop.f32.mrf.mxu0
        %v1013 = vpop.f32.mrf.mxu0
        %v1014 = vadd.f32 0.0, %v1013
        %v1015 = vpop.f32.mrf.mxu0
        %1016 = vdwg.mxu0
        %v1017 = vpack.c.bf16 %v1014, %v1011
        %v1018 = vld [vmem:[%s11] sm:$0x1]
        %v1020 = vlaneseq
        %v1021 = vshrl.u32 %v1020, 7
        %v1022 = vsub.s32 0, %v1021
        %v1023 = vrot.slane %v1018, %v1022
        %1025 = vmatprep.subr.bf16.mxu0 0
        %1026 = vmatpush1.bf16.msra.mxu0 0
        %1027 = vmatprep.subr.bf16.mxu0 0
        %1028 = vmatpush1.bf16.msra.mxu0 0
        %1029 = vmatprep.subr.bf16.mxu0 0
        %1030 = vmatpush1.bf16.msra.mxu0 0
        %1031 = vmatprep.subr.bf16.mxu0 0
        %1032 = vmatpush1.bf16.msra.mxu0 0
        %1033 = vmatprep.subr.bf16.mxu0 0
        %1034 = vmatpush1.bf16.msra.mxu0 0
        %1035 = vmatprep.subr.bf16.mxu0 0
        %1036 = vmatpush1.bf16.msra.mxu0 0
        %1037 = vmatprep.subr.bf16.mxu0 0
        %1038 = vmatpush1.bf16.msra.mxu0 0
        %1039 = vmatprep.subr.bf16.mxu0 0
        %1040 = vmatpush1.bf16.msra.mxu0 %v1017
        %1041 = vmatprep.subr.bf16.mxu0 0
        %1042 = vmatpush2.bf16.msra.mxu0 0
        %1043 = vmatprep.subr.bf16.mxu0 0
        %1044 = vmatpush2.bf16.msra.mxu0 0
        %1045 = vmatprep.subr.bf16.mxu0 0
        %1046 = vmatpush2.bf16.msra.mxu0 0
        %1047 = vmatprep.subr.bf16.mxu0 0
        %1048 = vmatpush2.bf16.msra.mxu0 0
        %1049 = vmatprep.subr.bf16.mxu0 0
        %1050 = vmatpush2.bf16.msra.mxu0 0
        %1051 = vmatprep.subr.bf16.mxu0 0
        %1052 = vmatpush2.bf16.msra.mxu0 0
        %1053 = vmatprep.subr.bf16.mxu0 0
        %1054 = vmatpush2.bf16.msra.mxu0 0
        %1055 = vmatprep.subr.bf16.mxu0 0
        %1056 = vmatpush2.bf16.msra.mxu0 0
        %1057 = vmatprep.mubr.bf16.mxu0 0
        %1058 = vmatmul.mubr.bf16.gmra.mxu0 %v818
        %v1059 = vpop.f32.mrf.mxu0
        %v1060 = vadd.f32 %v1023, %v1059
        %v1061 = vpop.f32.mrf.mxu0
        %v1062 = vpop.f32.mrf.mxu0
        %v1063 = vadd.f32 %v1023, %v1062
        %v1064 = vpop.f32.mrf.mxu0
        %1065 = vdwg.mxu0
        %v1066 = vmax.f32 %v1060, 0.0
        %v1067 = vmax.f32 %v1063, 0.0
        %v1068 = vld [vmem:[%s536] sm:$0x1]
        %v1069 = vlaneseq
        %v1070 = vshrl.u32 %v1069, 7
        %v1071 = vsub.s32 0, %v1070
        %v1072 = vrot.slane %v1068, %v1071
        %vm1073 = vcmp.eq.s32.totalorder %v553, %v1072
        %v1074 = vsel %vm1073, 1, 0
        %v1075 = vcvt.s32.f32 %v1074
        %vm1076 = vcmask 123904
        %v1077 = vsel %vm1076, %v1075, 0.0
        %1078 = vadd.xlane.f32.xlu0 %v1077
        %v1079 = vpop.xlane.xlu0 %1078
        %v1080 = vmax.f32 %v1079, 1.0
        %v1082 = vsel %vm816, %v1075, 0
        %1084 = vmatprep.subr.mxu0 0.0
        %1085 = vmatpush1.msra.mxu0 0.0
        %1086 = vmatprep.subr.mxu0 0.0
        %1087 = vmatpush1.msra.mxu0 0.0
        %1088 = vmatprep.subr.mxu0 0.0
        %1089 = vmatpush1.msra.mxu0 0.0
        %1090 = vmatprep.subr.mxu0 0.0
        %1091 = vmatpush1.msra.mxu0 0.0
        %1092 = vmatprep.subr.mxu0 0.0
        %1093 = vmatpush1.msra.mxu0 0.0
        %1094 = vmatprep.subr.mxu0 0.0
        %1095 = vmatpush1.msra.mxu0 0.0
        %1096 = vmatprep.subr.mxu0 0.0
        %1097 = vmatpush1.msra.mxu0 0.0
        %1098 = vmatprep.subr.mxu0 0.0
        %1099 = vmatpush1.msra.mxu0 0.0
        %1100 = vmatprep.subr.mxu0 0.0
        %1101 = vmatpush1.msra.mxu0 0.0
        %1102 = vmatprep.subr.mxu0 0.0
        %1103 = vmatpush1.msra.mxu0 0.0
        %1104 = vmatprep.subr.mxu0 0.0
        %1105 = vmatpush1.msra.mxu0 0.0
        %1106 = vmatprep.subr.mxu0 0.0
        %1107 = vmatpush1.msra.mxu0 0.0
        %1108 = vmatprep.subr.mxu0 0.0
        %1109 = vmatpush1.msra.mxu0 0.0
        %1110 = vmatprep.subr.mxu0 0.0
        %1111 = vmatpush1.msra.mxu0 0.0
        %1112 = vmatprep.subr.mxu0 0.0
        %1113 = vmatpush1.msra.mxu0 %v1067
        %1114 = vmatprep.subr.mxu0 0.0
        %1115 = vmatpush1.msra.mxu0 %v1066
        %1116 = vmatprep.subr.mxu0 0.0
        %1117 = vmatpush2.msra.mxu0 0.0
        %1118 = vmatprep.subr.mxu0 0.0
        %1119 = vmatpush2.msra.mxu0 0.0
        %1120 = vmatprep.subr.mxu0 0.0
        %1121 = vmatpush2.msra.mxu0 0.0
        %1122 = vmatprep.subr.mxu0 0.0
        %1123 = vmatpush2.msra.mxu0 0.0
        %1124 = vmatprep.subr.mxu0 0.0
        %1125 = vmatpush2.msra.mxu0 0.0
        %1126 = vmatprep.subr.mxu0 0.0
        %1127 = vmatpush2.msra.mxu0 0.0
        %1128 = vmatprep.subr.mxu0 0.0
        %1129 = vmatpush2.msra.mxu0 0.0
        %1130 = vmatprep.subr.mxu0 0.0
        %1131 = vmatpush2.msra.mxu0 0.0
        %1132 = vmatprep.subr.mxu0 0.0
        %1133 = vmatpush2.msra.mxu0 0.0
        %1134 = vmatprep.subr.mxu0 0.0
        %1135 = vmatpush2.msra.mxu0 0.0
        %1136 = vmatprep.subr.mxu0 0.0
        %1137 = vmatpush2.msra.mxu0 0.0
        %1138 = vmatprep.subr.mxu0 0.0
        %1139 = vmatpush2.msra.mxu0 0.0
        %1140 = vmatprep.subr.mxu0 0.0
        %1141 = vmatpush2.msra.mxu0 0.0
        %1142 = vmatprep.subr.mxu0 0.0
        %1143 = vmatpush2.msra.mxu0 0.0
        %1144 = vmatprep.subr.mxu0 0.0
        %1145 = vmatpush2.msra.mxu0 0.0
        %1146 = vmatprep.subr.mxu0 0.0
        %1147 = vmatpush2.msra.mxu0 0.0
        %1148 = vmatprep.mubr.f32.mxu0 0.0
        %1149 = vmatmul.mubr.f32.gmra.mxu0 %v1082
        %v1150 = vpop.f32.mrf.mxu0
        %v1151 = vadd.f32 0.0, %v1150
        %v1152 = vpop.f32.mrf.mxu0
        %1153 = vdwg.mxu0
        %v1154 = vrcp.pop %v1080
        %v1155 = vmul.f32 %v1151, %v1154
        %v1156 = vld [vmem:[%s12] sm:$0xff]
        %v1157 = vld [vmem:[%s12 + $0x8] sm:$0xff]
        %v1158 = vld [vmem:[%s12 + $0x10] sm:$0xff]
        %v1159 = vld [vmem:[%s12 + $0x18] sm:$0xff]
        %v1160 = vld [vmem:[%s13] sm:$0x1]
        %v1162 = vlaneseq
        %v1163 = vshrl.u32 %v1162, 7
        %v1164 = vsub.s32 0, %v1163
        %v1165 = vrot.slane %v1160, %v1164
        %v1168 = vsel %vm870, %v1155, 0
        %1170 = vmatprep.subr.mxu0 0.0
        %1171 = vmatpush1.msra.mxu0 0.0
        %1172 = vmatprep.subr.mxu0 0.0
        %1173 = vmatpush1.msra.mxu0 0.0
        %1174 = vmatprep.subr.mxu0 0.0
        %1175 = vmatpush1.msra.mxu0 0.0
        %1176 = vmatprep.subr.mxu0 0.0
        %1177 = vmatpush1.msra.mxu0 0.0
        %1178 = vmatprep.subr.mxu0 0.0
        %1179 = vmatpush1.msra.mxu0 0.0
        %1180 = vmatprep.subr.mxu0 0.0
        %1181 = vmatpush1.msra.mxu0 0.0
        %1182 = vmatprep.subr.mxu0 0.0
        %1183 = vmatpush1.msra.mxu0 0.0
        %1184 = vmatprep.subr.mxu0 0.0
        %1185 = vmatpush1.msra.mxu0 0.0
        %1186 = vmatprep.subr.mxu0 0.0
        %1187 = vmatpush1.msra.mxu0 0.0
        %1188 = vmatprep.subr.mxu0 0.0
        %1189 = vmatpush1.msra.mxu0 0.0
        %1190 = vmatprep.subr.mxu0 0.0
        %1191 = vmatpush1.msra.mxu0 0.0
        %1192 = vmatprep.subr.mxu0 0.0
        %1193 = vmatpush1.msra.mxu0 0.0
        %1194 = vmatprep.subr.mxu0 0.0
        %1195 = vmatpush1.msra.mxu0 %v1159
        %1196 = vmatprep.subr.mxu0 0.0
        %1197 = vmatpush1.msra.mxu0 %v1158
        %1198 = vmatprep.subr.mxu0 0.0
        %1199 = vmatpush1.msra.mxu0 %v1157
        %1200 = vmatprep.subr.mxu0 0.0
        %1201 = vmatpush1.msra.mxu0 %v1156
        %1202 = vmatprep.subr.mxu0 0.0
        %1203 = vmatpush2.msra.mxu0 0.0
        %1204 = vmatprep.subr.mxu0 0.0
        %1205 = vmatpush2.msra.mxu0 0.0
        %1206 = vmatprep.subr.mxu0 0.0
        %1207 = vmatpush2.msra.mxu0 0.0
        %1208 = vmatprep.subr.mxu0 0.0
        %1209 = vmatpush2.msra.mxu0 0.0
        %1210 = vmatprep.subr.mxu0 0.0
        %1211 = vmatpush2.msra.mxu0 0.0
        %1212 = vmatprep.subr.mxu0 0.0
        %1213 = vmatpush2.msra.mxu0 0.0
        %1214 = vmatprep.subr.mxu0 0.0
        %1215 = vmatpush2.msra.mxu0 0.0
        %1216 = vmatprep.subr.mxu0 0.0
        %1217 = vmatpush2.msra.mxu0 0.0
        %1218 = vmatprep.subr.mxu0 0.0
        %1219 = vmatpush2.msra.mxu0 0.0
        %1220 = vmatprep.subr.mxu0 0.0
        %1221 = vmatpush2.msra.mxu0 0.0
        %1222 = vmatprep.subr.mxu0 0.0
        %1223 = vmatpush2.msra.mxu0 0.0
        %1224 = vmatprep.subr.mxu0 0.0
        %1225 = vmatpush2.msra.mxu0 0.0
        %1226 = vmatprep.subr.mxu0 0.0
        %1227 = vmatpush2.msra.mxu0 0.0
        %1228 = vmatprep.subr.mxu0 0.0
        %1229 = vmatpush2.msra.mxu0 0.0
        %1230 = vmatprep.subr.mxu0 0.0
        %1231 = vmatpush2.msra.mxu0 0.0
        %1232 = vmatprep.subr.mxu0 0.0
        %1233 = vmatpush2.msra.mxu0 0.0
        %1234 = vmatprep.mubr.f32.mxu0 0.0
        %1235 = vmatmul.mubr.f32.gmra.mxu0 %v1168
        %v1236 = vpop.f32.mrf.mxu0
        %v1237 = vadd.f32 %v1165, %v1236
        %v1238 = vpop.f32.mrf.mxu0
        %1239 = vdwg.mxu0
        %vm1240 = vcmask 25600
        %1241 = vst.msk [vmem:[%s519] sm:$0x3] %vm1240, %v1237
        %s1242 = sand.u32 %s360, 1
        %s1243 = scalar_lea.sflag [#allocation3], %s1242
        %s1244 = sand.u32 %s360, 1
        %s1245 = smul.addr %s1244, 2
        %s1246 = scalar_lea.vmem [#allocation2], %s1245
        // Predicated region
        $region77: #{gcn_classifier_forward.1} parent=75 // pred_check
          %p1247 = pneg %p370
        $region78: #{gcn_classifier_forward.1} parent=75 // pred_check_branch
          %1249 = sbr.rel (%p1247) target = $region80
        $region79: #{gcn_classifier_forward.1} parent=75 // pred_region
          %s1251 = ssub.s32 32, 32
          %1252 = vsyncadd %s1243, %s1251
          %s1253 = smul.addr %s28, 32
          %s1254 = scalar_lea.hbm %s14, %s1253
          %s1256 = sshll.u32 %s1246, 4
          %s1257 = int_to_ptr.vmem [resolvable:$true] %s1256
          %1259 = dma.vmem_to_hbm [thread:$0]  %s1257, 32, %s1254, %s1243
        $region80: #{gcn_classifier_forward.1} parent=75 // pred_fallthru
          _
      $region76: #{gcn_classifier_forward.1} parent=5 // pred_fallthru
        _
      %p1260 = scmp.le.s32.totalorder 2, %s23
      // Predicated region
      $region81: #{gcn_classifier_forward.1} parent=5 // pred_check
        %p1261 = pneg %p1260
      $region82: #{gcn_classifier_forward.1} parent=5 // pred_check_branch
        %1263 = sbr.rel (%p1261) target = $region84
      $region83: #{gcn_classifier_forward.1} parent=5 // pred_region
        %s1264 = ssub.s32 %s23, 2
        // Predicated region
        $region85: #{gcn_classifier_forward.1} parent=83 // pred_check
          %p1265 = pneg %p376
        $region86: #{gcn_classifier_forward.1} parent=83 // pred_check_branch
          %1267 = sbr.rel (%p1265) target = $region88
        $region87: #{gcn_classifier_forward.1} parent=83 // pred_region
          %s1268 = sand.u32 %s361, 1
          %s1269 = scalar_lea.sflag [#allocation3], %s1268
          %s1270 = sand.u32 %s361, 1
          %s1271 = smul.addr %s1270, 2
          %s1272 = scalar_lea.vmem [#allocation2], %s1271
          %1273 = dma.done %s1269, 32
        $region88: #{gcn_classifier_forward.1} parent=83 // pred_fallthru
          _
      $region84: #{gcn_classifier_forward.1} parent=5 // pred_fallthru
        _
    $region6: #{gcn_classifier_forward.1} parent=1 // loop_footer
      %s27 = sadd.s32 1, %s23
    $region7: #{gcn_classifier_forward.1} parent=1 // loop_footer_branch
      %22 = sbr.rel target = $region3
    $region8: #{gcn_classifier_forward.1} parent=1 // loop_exit
      _
    %1274 = vsyncpa [#allocation3], 1
    %s1275 = scalar_lea.sflag [#allocation3], 1
    %1276 = vsyncpa %s1275, 1

</llo_original>
